<compile_context>
chip_gen: v7x
topology: tpu7x:2x2x1
jax: 0.10.0
libtpu: 0.0.40
codegen_flags: <defaults>
</compile_context>

<pallas_src>
import functools

import jax
import jax.numpy as jnp
from jax.experimental import pallas as pl
from jax.experimental.pallas import tpu as pltpu

_LN_EPS = 1e-5


@functools.lru_cache(maxsize=None)
def _vmem_limit_bytes():
    """75% of the chip's VMEM (leaves headroom for Mosaic's own buffers)."""
    try:
        cap = int(pltpu.get_tpu_info().vmem_capacity_bytes)
    except Exception:
        cap = 64 * 1024 * 1024          # conservative fallback (v7x per-TC size)
    lim = (cap * 3) // 4
    return max(32 * 1024 * 1024, min(lim, 96 * 1024 * 1024))


def _layernorm_f32(x, gamma, beta, eps):
    mu = jnp.mean(x, axis=-1, keepdims=True)
    xc = x - mu
    var = jnp.mean(xc * xc, axis=-1, keepdims=True)
    return xc * jax.lax.rsqrt(var + eps) * gamma + beta


# ----------------------------- Pallas kernels -----------------------------

def _encoder_kernel(h_ref,
                    g1_ref, b1_ref, wqkv_ref, bqkv_ref, wo_ref, bo_ref,
                    g2_ref, b2_ref, w1_ref, bf1_ref, w2_ref, bf2_ref,
                    o_ref, p_ref, h_carry,
                    *, n_head, scale, n_layer):
    """One grid step = one (batch, layer) pair.  h carried in VMEM over layers."""
    l = pl.program_id(1)

    @pl.when(l == 0)
    def _():                                           # load h once per batch item
        h_carry[...] = h_ref[0]

    h = h_carry[...]                                   # (T, D) f32
    T, D = h.shape
    Dh = D // n_head

    # ---------------- attention sub-block ----------------
    nrm = _layernorm_f32(h, g1_ref[0], b1_ref[0], _LN_EPS)
    # Fused QKV projection: one MXU pass, bf16 inputs, f32 accumulation.
    qkv = jnp.dot(nrm.astype(jnp.bfloat16), wqkv_ref[0],
                  preferred_element_type=jnp.float32) + bqkv_ref[0]
    qb = (qkv[:, 0 * D:1 * D] * scale).astype(jnp.bfloat16)  # fold 1/sqrt(Dh) into q
    kb = qkv[:, 1 * D:2 * D].astype(jnp.bfloat16)
    vb = qkv[:, 2 * D:3 * D].astype(jnp.bfloat16)

    heads = []
    for hd in range(n_head):                           # static unroll over heads
        lo, hi = hd * Dh, (hd + 1) * Dh
        # s = q_h @ k_h^T without materializing the transpose.
        s = jax.lax.dot_general(qb[:, lo:hi], kb[:, lo:hi],
                                (((1,), (1,)), ((), ())),
                                preferred_element_type=jnp.float32)    # (T, T)
        m = jnp.max(s, axis=-1, keepdims=True)
        e = jnp.exp(s - m)
        # Cast once; reuse for the attention-map writeback AND the P@V matmul.
        pb = (e * pl.reciprocal(jnp.sum(e, axis=-1, keepdims=True), approx=True)
              ).astype(jnp.bfloat16)
        p_ref[0, 0, hd] = pb                           # bf16 attention-map writeback
        heads.append(jnp.dot(pb, vb[:, lo:hi],
                             preferred_element_type=jnp.float32))      # (T, Dh)

    # Concat heads, then ONE output projection with full K=D contraction.
    o_cat = jnp.concatenate(heads, axis=-1)            # (T, D) f32
    h = h + jnp.dot(o_cat.astype(jnp.bfloat16), wo_ref[0],
                    preferred_element_type=jnp.float32) + bo_ref[0]

    # ---------------- FFN sub-block ----------------
    nrm2 = _layernorm_f32(h, g2_ref[0], b2_ref[0], _LN_EPS)
    ff = jnp.dot(nrm2.astype(jnp.bfloat16), w1_ref[0],
                 preferred_element_type=jnp.float32) + bf1_ref[0]
    ff = jnp.maximum(ff, 0.0)
    h = h + jnp.dot(ff.astype(jnp.bfloat16), w2_ref[0],
                    preferred_element_type=jnp.float32) + bf2_ref[0]

    h_carry[...] = h                                   # carry to the next layer

    @pl.when(l == n_layer - 1)
    def _():                                           # write back only once per b
        o_ref[0] = h


def _head_kernel(h_ref, w1_ref, b1_ref, w2_ref, b2_ref, o_ref):
    """Fused: mean-pool over T -> fc1 (ReLU) -> dropout(identity) -> fc2."""
    pooled = jnp.mean(h_ref[...], axis=1)              # (tb, D) f32
    hid = jnp.dot(pooled.astype(jnp.bfloat16), w1_ref[...],
                  preferred_element_type=jnp.float32) + b1_ref[...]
    hid = jnp.maximum(hid, 0.0)
    # TODO(synk): nn.Dropout(0.2) is identity here (inference mode, no RNG mask).
    o_ref[...] = jnp.dot(hid.astype(jnp.bfloat16), w2_ref[...],
                         preferred_element_type=jnp.float32) + b2_ref[...]


# ----------------------------- pallas_call wrappers -----------------------------

def encoder_layers(h, params, n_head):
    """Whole encoder stack in ONE pallas_call; returns (h_out, attention_maps)."""
    B, T, D = h.shape
    L = params["wqkv"].shape[0]
    Dff = params["w_ff1"].shape[2]
    H = n_head
    Dh = D // H
    scale = 1.0 / (Dh ** 0.5)

    def lmap(shape):                                   # per-layer stacked weights
        nd = len(shape)
        return pl.BlockSpec((1,) + shape[1:], lambda b, l, _nd=nd: (l,) + (0,) * (_nd - 1))

    flops_layer = 2 * T * D * (4 * D + 2 * T + 2 * Dff)
    w_bytes_layer = 2 * D * (4 * D + 2 * Dff) + 4 * (3 * D + 6 * D + Dff)
    cost = pl.CostEstimate(
        flops=B * L * flops_layer,
        transcendentals=B * L * (H * T * T + 2 * T),
        bytes_accessed=(2 * B * T * D * 4            # h in / out
                        + B * L * w_bytes_layer      # weights per grid step
                        + B * L * H * T * T * 2))    # bf16 attention maps

    return pl.pallas_call(
        functools.partial(_encoder_kernel, n_head=H, scale=scale, n_layer=L),
        grid=(B, L),
        out_shape=(
            jax.ShapeDtypeStruct((B, T, D), jnp.float32),
            jax.ShapeDtypeStruct((L, B, H, T, T), jnp.bfloat16),
        ),
        in_specs=[
            pl.BlockSpec((1, T, D), lambda b, l: (b, 0, 0)),
            lmap((L, 1, D)), lmap((L, 1, D)),                  # ln1 g/b
            lmap((L, D, 3 * D)), lmap((L, 1, 3 * D)),          # qkv w/b
            lmap((L, D, D)), lmap((L, 1, D)),                  # out-proj w/b
            lmap((L, 1, D)), lmap((L, 1, D)),                  # ln2 g/b
            lmap((L, D, Dff)), lmap((L, 1, Dff)),              # ff1 w/b
            lmap((L, Dff, D)), lmap((L, 1, D)),                # ff2 w/b
        ],
        out_specs=(
            pl.BlockSpec((1, T, D), lambda b, l: (b, 0, 0)),
            pl.BlockSpec((1, 1, H, T, T), lambda b, l: (l, b, 0, 0, 0)),
        ),
        scratch_shapes=[pltpu.VMEM((T, D), jnp.float32)],
        compiler_params=pltpu.CompilerParams(
            dimension_semantics=("parallel", "arbitrary"),
            vmem_limit_bytes=_vmem_limit_bytes()),
        cost_estimate=cost,
    )(h,
      params["ln1_g"], params["ln1_b"],
      params["wqkv"], params["bqkv"],
      params["wo"], params["bo"],
      params["ln2_g"], params["ln2_b"],
      params["w_ff1"], params["b_ff1"],
      params["w_ff2"], params["b_ff2"])


def classifier_head(h, w1, b1, w2, b2):
    B, T, D = h.shape
    H1 = w1.shape[1]
    O = w2.shape[1]
    # Lane-dense output: pad the logits width to a multiple of 128 (unmasked
    # stores), slice back in the wrapper.
    O_pad = max(128, ((O + 127) // 128) * 128)
    w2p = jnp.pad(w2, ((0, 0), (0, O_pad - O)))
    b2p = jnp.pad(b2, ((0, 0), (0, O_pad - O)))

    tb = min(B, 256)
    if tb % 8 != 0:
        tb = B                                          # full-batch block is always legal

    cost = pl.CostEstimate(
        flops=2 * B * D * H1 + 2 * B * H1 * O_pad,
        transcendentals=0,
        bytes_accessed=B * T * D * 4 + (D * H1 + H1 * O_pad) * 2 + B * O_pad * 4)

    out = pl.pallas_call(
        _head_kernel,
        grid=(pl.cdiv(B, tb),),
        out_shape=jax.ShapeDtypeStruct((B, O_pad), jnp.float32),
        in_specs=[
            pl.BlockSpec((tb, T, D), lambda i: (i, 0, 0)),
            pl.BlockSpec((D, H1), lambda i: (0, 0)),
            pl.BlockSpec((1, H1), lambda i: (0, 0)),
            pl.BlockSpec((H1, O_pad), lambda i: (0, 0)),
            pl.BlockSpec((1, O_pad), lambda i: (0, 0)),
        ],
        out_specs=pl.BlockSpec((tb, O_pad), lambda i: (i, 0)),
        compiler_params=pltpu.CompilerParams(
            dimension_semantics=("parallel",),
            vmem_limit_bytes=_vmem_limit_bytes()),
        cost_estimate=cost,
    )(h, w1, b1, w2p, b2p)
    return out[:, :O]


# ----------------------------- Model (glue) -----------------------------

def init_params(key, *, vocab_size, block_size, n_embd, n_head, n_layer,
                hidden_dim, output_dim):
    del n_head
    D = n_embd
    Dff = 4 * D
    L = n_layer
    keys = jax.random.split(key, 8)
    s = 0.02
    bf16 = jnp.bfloat16   # matmul weights stored bf16; biases / LN params f32

    def normal(k, shape, dtype=jnp.float32):
        return (s * jax.random.normal(k, shape, jnp.float32)).astype(dtype)

    return {
        "tok_emb": normal(keys[0], (vocab_size, D)),
        "pos_emb": normal(keys[1], (block_size, D)),
        # --- per-layer weights stacked along a leading L axis ---
        "ln1_g": jnp.ones((L, 1, D), jnp.float32),
        "ln1_b": jnp.zeros((L, 1, D), jnp.float32),
        "wqkv": normal(keys[2], (L, D, 3 * D), bf16),   # fused QKV weight
        "bqkv": jnp.zeros((L, 1, 3 * D), jnp.float32),
        "wo": normal(keys[3], (L, D, D), bf16),
        "bo": jnp.zeros((L, 1, D), jnp.float32),
        "ln2_g": jnp.ones((L, 1, D), jnp.float32),
        "ln2_b": jnp.zeros((L, 1, D), jnp.float32),
        "w_ff1": normal(keys[4], (L, D, Dff), bf16),
        "b_ff1": jnp.zeros((L, 1, Dff), jnp.float32),
        "w_ff2": normal(keys[5], (L, Dff, D), bf16),
        "b_ff2": jnp.zeros((L, 1, D), jnp.float32),
        # --- classifier head ---
        "fc1_w": normal(keys[6], (D, hidden_dim), bf16),
        "fc1_b": jnp.zeros((1, hidden_dim), jnp.float32),
        "fc2_w": normal(keys[7], (hidden_dim, output_dim), bf16),
        "fc2_b": jnp.zeros((1, output_dim), jnp.float32),
    }


def classifier_forward(params, x, n_head, targets=None):
    """x: (B, T) int32 token ids -> (logits (B, output_dim), loss, attention_maps)."""
    B, T = x.shape

    # Embedding lookup (gather) — glue in plain JAX.
    h = params["tok_emb"][x] + params["pos_emb"][:T][None, :, :]    # (B, T, D) f32

    # Entire encoder stack: ONE pallas_call (h resident in VMEM across layers).
    h, attention_maps = encoder_layers(h, params, n_head)           # maps: (L,B,H,T,T) bf16

    # Mean-pool + fc1(ReLU) + dropout(identity) + fc2, fused in one kernel.
    logits = classifier_head(h, params["fc1_w"], params["fc1_b"],
                             params["fc2_w"], params["fc2_b"])

    loss = None
    if targets is not None:
        logp = jax.nn.log_softmax(logits, axis=-1)
        loss = -jnp.mean(jnp.take_along_axis(logp, targets[:, None], axis=-1))

    return logits, loss, attention_maps


# ----------------------------- Driver -----------------------------

if __name__ == "__main__":
    B, T = 2, 8
    vocab_size = 100
    n_embd = 32       # input_dim
    n_head = 2
    n_layer = 2
    hidden_dim = 32
    output_dim = 3

    key = jax.random.PRNGKey(0)
    k_param, k_x = jax.random.split(key)
    params = init_params(k_param, vocab_size=vocab_size, block_size=T,
                         n_embd=n_embd, n_head=n_head, n_layer=n_layer,
                         hidden_dim=hidden_dim, output_dim=output_dim)

    x = jax.random.randint(k_x, (B, T), 0, vocab_size, dtype=jnp.int32)

    forward = jax.jit(classifier_forward, static_argnames=("n_head",))
    logits, loss, attention_maps = forward(params, x, n_head=n_head)
    jax.block_until_ready(logits)
    jax.block_until_ready(attention_maps)

    assert logits.shape == (B, output_dim)
    assert attention_maps.shape == (n_layer, B, n_head, T, T)
    assert loss is None
    print("KERNEL_OK")
</pallas_src>

<mosaic_0001>
module attributes {stable_mosaic.version = 11 : i64} {
  func.func @_encoder_kernel(%arg0: i32, %arg1: i32, %arg2: memref<1x8x32xf32, #tpu.memory_space<vmem>>, %arg3: memref<1x1x32xf32, #tpu.memory_space<vmem>>, %arg4: memref<1x1x32xf32, #tpu.memory_space<vmem>>, %arg5: memref<1x32x96xbf16, #tpu.memory_space<vmem>>, %arg6: memref<1x1x96xf32, #tpu.memory_space<vmem>>, %arg7: memref<1x32x32xbf16, #tpu.memory_space<vmem>>, %arg8: memref<1x1x32xf32, #tpu.memory_space<vmem>>, %arg9: memref<1x1x32xf32, #tpu.memory_space<vmem>>, %arg10: memref<1x1x32xf32, #tpu.memory_space<vmem>>, %arg11: memref<1x32x128xbf16, #tpu.memory_space<vmem>>, %arg12: memref<1x1x128xf32, #tpu.memory_space<vmem>>, %arg13: memref<1x128x32xbf16, #tpu.memory_space<vmem>>, %arg14: memref<1x1x32xf32, #tpu.memory_space<vmem>>, %arg15: memref<1x8x32xf32, #tpu.memory_space<vmem>>, %arg16: memref<1x1x2x8x8xbf16, #tpu.memory_space<vmem>>, %arg17: memref<8x32xf32, #tpu.memory_space<vmem>>) attributes {dimension_semantics = [#tpu.dimension_semantics<parallel>, #tpu.dimension_semantics<arbitrary>], iteration_bounds = array<i64: 2, 2>, scalar_prefetch = 0 : i64, scratch_operands = 1 : i64, tpu.core_type = #tpu.core_type<tc>, window_params = [{transform_indices = @transform_0, window_bounds = array<i64: 1, 8, 32>}, {transform_indices = @transform_1, window_bounds = array<i64: 1, 1, 32>}, {transform_indices = @transform_2, window_bounds = array<i64: 1, 1, 32>}, {transform_indices = @transform_3, window_bounds = array<i64: 1, 32, 96>}, {transform_indices = @transform_4, window_bounds = array<i64: 1, 1, 96>}, {transform_indices = @transform_5, window_bounds = array<i64: 1, 32, 32>}, {transform_indices = @transform_6, window_bounds = array<i64: 1, 1, 32>}, {transform_indices = @transform_7, window_bounds = array<i64: 1, 1, 32>}, {transform_indices = @transform_8, window_bounds = array<i64: 1, 1, 32>}, {transform_indices = @transform_9, window_bounds = array<i64: 1, 32, 128>}, {transform_indices = @transform_10, window_bounds = array<i64: 1, 1, 128>}, {transform_indices = @transform_11, window_bounds = array<i64: 1, 128, 32>}, {transform_indices = @transform_12, window_bounds = array<i64: 1, 1, 32>}, {transform_indices = @transform_13, window_bounds = array<i64: 1, 8, 32>}, {transform_indices = @transform_14, window_bounds = array<i64: 1, 1, 2, 8, 8>}]} {
    %c0_i32 = arith.constant 0 : i32
    %0 = arith.cmpi eq, %arg1, %c0_i32 : i32
    %1 = arith.extui %0 : i1 to i32
    %c0_i32_0 = arith.constant 0 : i32
    %2 = arith.cmpi ne, %1, %c0_i32_0 : i32
    scf.if %2 {
      %c0_73 = arith.constant 0 : index
      %c0_74 = arith.constant 0 : index
      %c0_75 = arith.constant 0 : index
      %139 = vector.load %arg2[%c0_73, %c0_74, %c0_75] : memref<1x8x32xf32, #tpu.memory_space<vmem>>, vector<1x8x32xf32>
      %140 = vector.shape_cast %139 : vector<1x8x32xf32> to vector<8x32xf32>
      %c0_76 = arith.constant 0 : index
      %c0_77 = arith.constant 0 : index
      %141 = vector.load %arg17[%c0_76, %c0_77] : memref<8x32xf32, #tpu.memory_space<vmem>>, vector<8x32xf32>
      tpu.vector_store %arg17[%c0_76, %c0_77], %140 {strides = array<i32>} : memref<8x32xf32, #tpu.memory_space<vmem>>, vector<8x32xf32>,
    } else {
    }
    %c0 = arith.constant 0 : index
    %c0_1 = arith.constant 0 : index
    %3 = vector.load %arg17[%c0, %c0_1] : memref<8x32xf32, #tpu.memory_space<vmem>>, vector<8x32xf32>
    %c0_2 = arith.constant 0 : index
    %c0_3 = arith.constant 0 : index
    %c0_4 = arith.constant 0 : index
    %4 = vector.load %arg3[%c0_2, %c0_3, %c0_4] : memref<1x1x32xf32, #tpu.memory_space<vmem>>, vector<1x1x32xf32>
    %5 = vector.shape_cast %4 : vector<1x1x32xf32> to vector<1x32xf32>
    %c0_5 = arith.constant 0 : index
    %c0_6 = arith.constant 0 : index
    %c0_7 = arith.constant 0 : index
    %6 = vector.load %arg4[%c0_5, %c0_6, %c0_7] : memref<1x1x32xf32, #tpu.memory_space<vmem>>, vector<1x1x32xf32>
    %7 = vector.shape_cast %6 : vector<1x1x32xf32> to vector<1x32xf32>
    %cst = arith.constant dense<0.000000e+00> : vector<8xf32>
    %8 = vector.multi_reduction <add>, %3, %cst [1] : vector<8x32xf32> to vector<8xf32>
    %9 = vector.shape_cast %8 : vector<8xf32> to vector<8x1xf32>
    %cst_8 = arith.constant 3.200000e+01 : f32
    %10 = vector.broadcast %cst_8 : f32 to vector<8x1xf32>
    %11 = arith.divf %9, %10 : vector<8x1xf32>
    %12 = vector.broadcast %11 : vector<8x1xf32> to vector<8x32xf32>
    %13 = arith.subf %3, %12 : vector<8x32xf32>
    %14 = arith.mulf %13, %13 : vector<8x32xf32>
    %cst_9 = arith.constant dense<0.000000e+00> : vector<8xf32>
    %15 = vector.multi_reduction <add>, %14, %cst_9 [1] : vector<8x32xf32> to vector<8xf32>
    %16 = vector.shape_cast %15 : vector<8xf32> to vector<8x1xf32>
    %cst_10 = arith.constant 3.200000e+01 : f32
    %17 = vector.broadcast %cst_10 : f32 to vector<8x1xf32>
    %18 = arith.divf %16, %17 : vector<8x1xf32>
    %cst_11 = arith.constant 9.99999974E-6 : f32
    %19 = vector.broadcast %cst_11 : f32 to vector<8x1xf32>
    %20 = arith.addf %18, %19 : vector<8x1xf32>
    %21 = math.rsqrt %20 : vector<8x1xf32>
    %22 = vector.broadcast %21 : vector<8x1xf32> to vector<8x32xf32>
    %23 = arith.mulf %13, %22 : vector<8x32xf32>
    %24 = vector.broadcast %5 : vector<1x32xf32> to vector<8x32xf32>
    %25 = arith.mulf %23, %24 : vector<8x32xf32>
    %26 = vector.broadcast %7 : vector<1x32xf32> to vector<8x32xf32>
    %27 = arith.addf %25, %26 : vector<8x32xf32>
    %28 = arith.truncf %27 : vector<8x32xf32> to vector<8x32xbf16>
    %c0_12 = arith.constant 0 : index
    %c0_13 = arith.constant 0 : index
    %c0_14 = arith.constant 0 : index
    %29 = vector.load %arg5[%c0_12, %c0_13, %c0_14] : memref<1x32x96xbf16, #tpu.memory_space<vmem>>, vector<1x32x96xbf16>
    %30 = vector.shape_cast %29 : vector<1x32x96xbf16> to vector<32x96xbf16>
    %cst_15 = arith.constant dense<0.000000e+00> : vector<8x96xf32>
    %31 = tpu.matmul %28, %30, %cst_15 {dimension_numbers = #tpu.dot_dimension_numbers<[1], [0], [0], [1], [0, 0, 1, 1], [], []>} : vector<8x32xbf16>, vector<32x96xbf16>, vector<8x96xf32> -> vector<8x96xf32>
    %c0_16 = arith.constant 0 : index
    %c0_17 = arith.constant 0 : index
    %c0_18 = arith.constant 0 : index
    %32 = vector.load %arg6[%c0_16, %c0_17, %c0_18] : memref<1x1x96xf32, #tpu.memory_space<vmem>>, vector<1x1x96xf32>
    %33 = vector.shape_cast %32 : vector<1x1x96xf32> to vector<1x96xf32>
    %34 = vector.broadcast %33 : vector<1x96xf32> to vector<8x96xf32>
    %35 = arith.addf %31, %34 : vector<8x96xf32>
    %36 = vector.extract_strided_slice %35 {offsets = [0, 0], sizes = [8, 32], strides = [1, 1]} : vector<8x96xf32> to vector<8x32xf32>
    %cst_19 = arith.constant 2.500000e-01 : f32
    %37 = vector.broadcast %cst_19 : f32 to vector<8x32xf32>
    %38 = arith.mulf %36, %37 : vector<8x32xf32>
    %39 = arith.truncf %38 : vector<8x32xf32> to vector<8x32xbf16>
    %40 = vector.extract_strided_slice %35 {offsets = [0, 32], sizes = [8, 32], strides = [1, 1]} : vector<8x96xf32> to vector<8x32xf32>
    %41 = arith.truncf %40 : vector<8x32xf32> to vector<8x32xbf16>
    %42 = vector.extract_strided_slice %35 {offsets = [0, 64], sizes = [8, 32], strides = [1, 1]} : vector<8x96xf32> to vector<8x32xf32>
    %43 = arith.truncf %42 : vector<8x32xf32> to vector<8x32xbf16>
    %44 = vector.extract_strided_slice %39 {offsets = [0, 0], sizes = [8, 16], strides = [1, 1]} : vector<8x32xbf16> to vector<8x16xbf16>
    %45 = vector.extract_strided_slice %41 {offsets = [0, 0], sizes = [8, 16], strides = [1, 1]} : vector<8x32xbf16> to vector<8x16xbf16>
    %cst_20 = arith.constant dense<0.000000e+00> : vector<8x8xf32>
    %46 = tpu.matmul %44, %45, %cst_20 {dimension_numbers = #tpu.dot_dimension_numbers<[1], [1], [0], [0], [0, 0, 1, 0], [], []>} : vector<8x16xbf16>, vector<8x16xbf16>, vector<8x8xf32> -> vector<8x8xf32>
    %cst_21 = arith.constant dense<0xFF800000> : vector<8xf32>
    %47 = vector.multi_reduction <maximumf>, %46, %cst_21 [1] : vector<8x8xf32> to vector<8xf32>
    %48 = vector.shape_cast %47 : vector<8xf32> to vector<8x1xf32>
    %49 = vector.broadcast %48 : vector<8x1xf32> to vector<8x8xf32>
    %50 = arith.subf %46, %49 : vector<8x8xf32>
    %51 = math.exp %50 : vector<8x8xf32>
    %cst_22 = arith.constant dense<0.000000e+00> : vector<8xf32>
    %52 = vector.multi_reduction <add>, %51, %cst_22 [1] : vector<8x8xf32> to vector<8xf32>
    %53 = vector.shape_cast %52 : vector<8xf32> to vector<8x1xf32>
    %54 = tpu.reciprocal %53 {approx = true} : vector<8x1xf32> -> vector<8x1xf32>
    %55 = vector.broadcast %54 : vector<8x1xf32> to vector<8x8xf32>
    %56 = arith.mulf %51, %55 : vector<8x8xf32>
    %57 = arith.truncf %56 : vector<8x8xf32> to vector<8x8xbf16>
    %c0_23 = arith.constant 0 : index
    %c0_24 = arith.constant 0 : index
    %c0_25 = arith.constant 0 : index
    %c0_26 = arith.constant 0 : index
    %c0_27 = arith.constant 0 : index
    %58 = vector.load %arg16[%c0_23, %c0_24, %c0_25, %c0_26, %c0_27] : memref<1x1x2x8x8xbf16, #tpu.memory_space<vmem>>, vector<1x1x1x8x8xbf16>
    %59 = vector.shape_cast %58 : vector<1x1x1x8x8xbf16> to vector<8x8xbf16>
    %60 = vector.shape_cast %57 : vector<8x8xbf16> to vector<1x1x1x8x8xbf16>
    tpu.vector_store %arg16[%c0_23, %c0_24, %c0_25, %c0_26, %c0_27], %60 {strides = array<i32>} : memref<1x1x2x8x8xbf16, #tpu.memory_space<vmem>>, vector<1x1x1x8x8xbf16>,
    %61 = vector.extract_strided_slice %43 {offsets = [0, 0], sizes = [8, 16], strides = [1, 1]} : vector<8x32xbf16> to vector<8x16xbf16>
    %cst_28 = arith.constant dense<0.000000e+00> : vector<8x16xf32>
    %62 = tpu.matmul %57, %61, %cst_28 {dimension_numbers = #tpu.dot_dimension_numbers<[1], [0], [0], [1], [0, 0, 1, 1], [], []>} : vector<8x8xbf16>, vector<8x16xbf16>, vector<8x16xf32> -> vector<8x16xf32>
    %63 = vector.extract_strided_slice %39 {offsets = [0, 16], sizes = [8, 16], strides = [1, 1]} : vector<8x32xbf16> to vector<8x16xbf16>
    %64 = vector.extract_strided_slice %41 {offsets = [0, 16], sizes = [8, 16], strides = [1, 1]} : vector<8x32xbf16> to vector<8x16xbf16>
    %cst_29 = arith.constant dense<0.000000e+00> : vector<8x8xf32>
    %65 = tpu.matmul %63, %64, %cst_29 {dimension_numbers = #tpu.dot_dimension_numbers<[1], [1], [0], [0], [0, 0, 1, 0], [], []>} : vector<8x16xbf16>, vector<8x16xbf16>, vector<8x8xf32> -> vector<8x8xf32>
    %cst_30 = arith.constant dense<0xFF800000> : vector<8xf32>
    %66 = vector.multi_reduction <maximumf>, %65, %cst_30 [1] : vector<8x8xf32> to vector<8xf32>
    %67 = vector.shape_cast %66 : vector<8xf32> to vector<8x1xf32>
    %68 = vector.broadcast %67 : vector<8x1xf32> to vector<8x8xf32>
    %69 = arith.subf %65, %68 : vector<8x8xf32>
    %70 = math.exp %69 : vector<8x8xf32>
    %cst_31 = arith.constant dense<0.000000e+00> : vector<8xf32>
    %71 = vector.multi_reduction <add>, %70, %cst_31 [1] : vector<8x8xf32> to vector<8xf32>
    %72 = vector.shape_cast %71 : vector<8xf32> to vector<8x1xf32>
    %73 = tpu.reciprocal %72 {approx = true} : vector<8x1xf32> -> vector<8x1xf32>
    %74 = vector.broadcast %73 : vector<8x1xf32> to vector<8x8xf32>
    %75 = arith.mulf %70, %74 : vector<8x8xf32>
    %76 = arith.truncf %75 : vector<8x8xf32> to vector<8x8xbf16>
    %c0_32 = arith.constant 0 : index
    %c0_33 = arith.constant 0 : index
    %c1 = arith.constant 1 : index
    %c0_34 = arith.constant 0 : index
    %c0_35 = arith.constant 0 : index
    %77 = vector.load %arg16[%c0_32, %c0_33, %c1, %c0_34, %c0_35] : memref<1x1x2x8x8xbf16, #tpu.memory_space<vmem>>, vector<1x1x1x8x8xbf16>
    %78 = vector.shape_cast %77 : vector<1x1x1x8x8xbf16> to vector<8x8xbf16>
    %79 = vector.shape_cast %76 : vector<8x8xbf16> to vector<1x1x1x8x8xbf16>
    tpu.vector_store %arg16[%c0_32, %c0_33, %c1, %c0_34, %c0_35], %79 {strides = array<i32>} : memref<1x1x2x8x8xbf16, #tpu.memory_space<vmem>>, vector<1x1x1x8x8xbf16>,
    %80 = vector.extract_strided_slice %43 {offsets = [0, 16], sizes = [8, 16], strides = [1, 1]} : vector<8x32xbf16> to vector<8x16xbf16>
    %cst_36 = arith.constant dense<0.000000e+00> : vector<8x16xf32>
    %81 = tpu.matmul %76, %80, %cst_36 {dimension_numbers = #tpu.dot_dimension_numbers<[1], [0], [0], [1], [0, 0, 1, 1], [], []>} : vector<8x8xbf16>, vector<8x16xbf16>, vector<8x16xf32> -> vector<8x16xf32>
    %82 = tpu.concatenate %62, %81 in 1 : vector<8x16xf32>, vector<8x16xf32> -> vector<8x32xf32>
    %83 = arith.truncf %82 : vector<8x32xf32> to vector<8x32xbf16>
    %c0_37 = arith.constant 0 : index
    %c0_38 = arith.constant 0 : index
    %c0_39 = arith.constant 0 : index
    %84 = vector.load %arg7[%c0_37, %c0_38, %c0_39] : memref<1x32x32xbf16, #tpu.memory_space<vmem>>, vector<1x32x32xbf16>
    %85 = vector.shape_cast %84 : vector<1x32x32xbf16> to vector<32x32xbf16>
    %cst_40 = arith.constant dense<0.000000e+00> : vector<8x32xf32>
    %86 = tpu.matmul %83, %85, %cst_40 {dimension_numbers = #tpu.dot_dimension_numbers<[1], [0], [0], [1], [0, 0, 1, 1], [], []>} : vector<8x32xbf16>, vector<32x32xbf16>, vector<8x32xf32> -> vector<8x32xf32>
    %87 = arith.addf %3, %86 : vector<8x32xf32>
    %c0_41 = arith.constant 0 : index
    %c0_42 = arith.constant 0 : index
    %c0_43 = arith.constant 0 : index
    %88 = vector.load %arg8[%c0_41, %c0_42, %c0_43] : memref<1x1x32xf32, #tpu.memory_space<vmem>>, vector<1x1x32xf32>
    %89 = vector.shape_cast %88 : vector<1x1x32xf32> to vector<1x32xf32>
    %90 = vector.broadcast %89 : vector<1x32xf32> to vector<8x32xf32>
    %91 = arith.addf %87, %90 : vector<8x32xf32>
    %c0_44 = arith.constant 0 : index
    %c0_45 = arith.constant 0 : index
    %c0_46 = arith.constant 0 : index
    %92 = vector.load %arg9[%c0_44, %c0_45, %c0_46] : memref<1x1x32xf32, #tpu.memory_space<vmem>>, vector<1x1x32xf32>
    %93 = vector.shape_cast %92 : vector<1x1x32xf32> to vector<1x32xf32>
    %c0_47 = arith.constant 0 : index
    %c0_48 = arith.constant 0 : index
    %c0_49 = arith.constant 0 : index
    %94 = vector.load %arg10[%c0_47, %c0_48, %c0_49] : memref<1x1x32xf32, #tpu.memory_space<vmem>>, vector<1x1x32xf32>
    %95 = vector.shape_cast %94 : vector<1x1x32xf32> to vector<1x32xf32>
    %cst_50 = arith.constant dense<0.000000e+00> : vector<8xf32>
    %96 = vector.multi_reduction <add>, %91, %cst_50 [1] : vector<8x32xf32> to vector<8xf32>
    %97 = vector.shape_cast %96 : vector<8xf32> to vector<8x1xf32>
    %cst_51 = arith.constant 3.200000e+01 : f32
    %98 = vector.broadcast %cst_51 : f32 to vector<8x1xf32>
    %99 = arith.divf %97, %98 : vector<8x1xf32>
    %100 = vector.broadcast %99 : vector<8x1xf32> to vector<8x32xf32>
    %101 = arith.subf %91, %100 : vector<8x32xf32>
    %102 = arith.mulf %101, %101 : vector<8x32xf32>
    %cst_52 = arith.constant dense<0.000000e+00> : vector<8xf32>
    %103 = vector.multi_reduction <add>, %102, %cst_52 [1] : vector<8x32xf32> to vector<8xf32>
    %104 = vector.shape_cast %103 : vector<8xf32> to vector<8x1xf32>
    %cst_53 = arith.constant 3.200000e+01 : f32
    %105 = vector.broadcast %cst_53 : f32 to vector<8x1xf32>
    %106 = arith.divf %104, %105 : vector<8x1xf32>
    %cst_54 = arith.constant 9.99999974E-6 : f32
    %107 = vector.broadcast %cst_54 : f32 to vector<8x1xf32>
    %108 = arith.addf %106, %107 : vector<8x1xf32>
    %109 = math.rsqrt %108 : vector<8x1xf32>
    %110 = vector.broadcast %109 : vector<8x1xf32> to vector<8x32xf32>
    %111 = arith.mulf %101, %110 : vector<8x32xf32>
    %112 = vector.broadcast %93 : vector<1x32xf32> to vector<8x32xf32>
    %113 = arith.mulf %111, %112 : vector<8x32xf32>
    %114 = vector.broadcast %95 : vector<1x32xf32> to vector<8x32xf32>
    %115 = arith.addf %113, %114 : vector<8x32xf32>
    %116 = arith.truncf %115 : vector<8x32xf32> to vector<8x32xbf16>
    %c0_55 = arith.constant 0 : index
    %c0_56 = arith.constant 0 : index
    %c0_57 = arith.constant 0 : index
    %117 = vector.load %arg11[%c0_55, %c0_56, %c0_57] : memref<1x32x128xbf16, #tpu.memory_space<vmem>>, vector<1x32x128xbf16>
    %118 = vector.shape_cast %117 : vector<1x32x128xbf16> to vector<32x128xbf16>
    %cst_58 = arith.constant dense<0.000000e+00> : vector<8x128xf32>
    %119 = tpu.matmul %116, %118, %cst_58 {dimension_numbers = #tpu.dot_dimension_numbers<[1], [0], [0], [1], [0, 0, 1, 1], [], []>} : vector<8x32xbf16>, vector<32x128xbf16>, vector<8x128xf32> -> vector<8x128xf32>
    %c0_59 = arith.constant 0 : index
    %c0_60 = arith.constant 0 : index
    %c0_61 = arith.constant 0 : index
    %120 = vector.load %arg12[%c0_59, %c0_60, %c0_61] : memref<1x1x128xf32, #tpu.memory_space<vmem>>, vector<1x1x128xf32>
    %121 = vector.shape_cast %120 : vector<1x1x128xf32> to vector<1x128xf32>
    %122 = vector.broadcast %121 : vector<1x128xf32> to vector<8x128xf32>
    %123 = arith.addf %119, %122 : vector<8x128xf32>
    %cst_62 = arith.constant 0.000000e+00 : f32
    %124 = vector.broadcast %cst_62 : f32 to vector<8x128xf32>
    %125 = arith.maximumf %123, %124 : vector<8x128xf32>
    %126 = arith.truncf %125 : vector<8x128xf32> to vector<8x128xbf16>
    %c0_63 = arith.constant 0 : index
    %c0_64 = arith.constant 0 : index
    %c0_65 = arith.constant 0 : index
    %127 = vector.load %arg13[%c0_63, %c0_64, %c0_65] : memref<1x128x32xbf16, #tpu.memory_space<vmem>>, vector<1x128x32xbf16>
    %128 = vector.shape_cast %127 : vector<1x128x32xbf16> to vector<128x32xbf16>
    %cst_66 = arith.constant dense<0.000000e+00> : vector<8x32xf32>
    %129 = tpu.matmul %126, %128, %cst_66 {dimension_numbers = #tpu.dot_dimension_numbers<[1], [0], [0], [1], [0, 0, 1, 1], [], []>} : vector<8x128xbf16>, vector<128x32xbf16>, vector<8x32xf32> -> vector<8x32xf32>
    %130 = arith.addf %91, %129 : vector<8x32xf32>
    %c0_67 = arith.constant 0 : index
    %c0_68 = arith.constant 0 : index
    %c0_69 = arith.constant 0 : index
    %131 = vector.load %arg14[%c0_67, %c0_68, %c0_69] : memref<1x1x32xf32, #tpu.memory_space<vmem>>, vector<1x1x32xf32>
    %132 = vector.shape_cast %131 : vector<1x1x32xf32> to vector<1x32xf32>
    %133 = vector.broadcast %132 : vector<1x32xf32> to vector<8x32xf32>
    %134 = arith.addf %130, %133 : vector<8x32xf32>
    %c0_70 = arith.constant 0 : index
    %c0_71 = arith.constant 0 : index
    %135 = vector.load %arg17[%c0_70, %c0_71] : memref<8x32xf32, #tpu.memory_space<vmem>>, vector<8x32xf32>
    tpu.vector_store %arg17[%c0_70, %c0_71], %134 {strides = array<i32>} : memref<8x32xf32, #tpu.memory_space<vmem>>, vector<8x32xf32>,
    %c1_i32 = arith.constant 1 : i32
    %136 = arith.cmpi eq, %arg1, %c1_i32 : i32
    %137 = arith.extui %136 : i1 to i32
    %c0_i32_72 = arith.constant 0 : i32
    %138 = arith.cmpi ne, %137, %c0_i32_72 : i32
    scf.if %138 {
      %c0_73 = arith.constant 0 : index
      %c0_74 = arith.constant 0 : index
      %c0_75 = arith.constant 0 : index
      %139 = vector.load %arg15[%c0_73, %c0_74, %c0_75] : memref<1x8x32xf32, #tpu.memory_space<vmem>>, vector<1x8x32xf32>
      %140 = vector.shape_cast %139 : vector<1x8x32xf32> to vector<8x32xf32>
      %141 = vector.shape_cast %134 : vector<8x32xf32> to vector<1x8x32xf32>
      tpu.vector_store %arg15[%c0_73, %c0_74, %c0_75], %141 {strides = array<i32>} : memref<1x8x32xf32, #tpu.memory_space<vmem>>, vector<1x8x32xf32>,
    } else {
    }
    return
  }
  func.func @transform_0(%arg0: i32, %arg1: i32) -> (i32, i32, i32) {
    %c0_i32 = arith.constant 0 : i32
    %c0_i32_0 = arith.constant 0 : i32
    %c0_i32_1 = arith.constant 0 : i32
    return %arg0, %c0_i32, %c0_i32_0 : i32, i32, i32
  }
  func.func @transform_1(%arg0: i32, %arg1: i32) -> (i32, i32, i32) {
    %c0_i32 = arith.constant 0 : i32
    %c0_i32_0 = arith.constant 0 : i32
    %c0_i32_1 = arith.constant 0 : i32
    return %arg1, %c0_i32, %c0_i32_0 : i32, i32, i32
  }
  func.func @transform_2(%arg0: i32, %arg1: i32) -> (i32, i32, i32) {
    %c0_i32 = arith.constant 0 : i32
    %c0_i32_0 = arith.constant 0 : i32
    %c0_i32_1 = arith.constant 0 : i32
    return %arg1, %c0_i32, %c0_i32_0 : i32, i32, i32
  }
  func.func @transform_3(%arg0: i32, %arg1: i32) -> (i32, i32, i32) {
    %c0_i32 = arith.constant 0 : i32
    %c0_i32_0 = arith.constant 0 : i32
    %c0_i32_1 = arith.constant 0 : i32
    return %arg1, %c0_i32, %c0_i32_0 : i32, i32, i32
  }
  func.func @transform_4(%arg0: i32, %arg1: i32) -> (i32, i32, i32) {
    %c0_i32 = arith.constant 0 : i32
    %c0_i32_0 = arith.constant 0 : i32
    %c0_i32_1 = arith.constant 0 : i32
    return %arg1, %c0_i32, %c0_i32_0 : i32, i32, i32
  }
  func.func @transform_5(%arg0: i32, %arg1: i32) -> (i32, i32, i32) {
    %c0_i32 = arith.constant 0 : i32
    %c0_i32_0 = arith.constant 0 : i32
    %c0_i32_1 = arith.constant 0 : i32
    return %arg1, %c0_i32, %c0_i32_0 : i32, i32, i32
  }
  func.func @transform_6(%arg0: i32, %arg1: i32) -> (i32, i32, i32) {
    %c0_i32 = arith.constant 0 : i32
    %c0_i32_0 = arith.constant 0 : i32
    %c0_i32_1 = arith.constant 0 : i32
    return %arg1, %c0_i32, %c0_i32_0 : i32, i32, i32
  }
  func.func @transform_7(%arg0: i32, %arg1: i32) -> (i32, i32, i32) {
    %c0_i32 = arith.constant 0 : i32
    %c0_i32_0 = arith.constant 0 : i32
    %c0_i32_1 = arith.constant 0 : i32
    return %arg1, %c0_i32, %c0_i32_0 : i32, i32, i32
  }
  func.func @transform_8(%arg0: i32, %arg1: i32) -> (i32, i32, i32) {
    %c0_i32 = arith.constant 0 : i32
    %c0_i32_0 = arith.constant 0 : i32
    %c0_i32_1 = arith.constant 0 : i32
    return %arg1, %c0_i32, %c0_i32_0 : i32, i32, i32
  }
  func.func @transform_9(%arg0: i32, %arg1: i32) -> (i32, i32, i32) {
    %c0_i32 = arith.constant 0 : i32
    %c0_i32_0 = arith.constant 0 : i32
    %c0_i32_1 = arith.constant 0 : i32
    return %arg1, %c0_i32, %c0_i32_0 : i32, i32, i32
  }
  func.func @transform_10(%arg0: i32, %arg1: i32) -> (i32, i32, i32) {
    %c0_i32 = arith.constant 0 : i32
    %c0_i32_0 = arith.constant 0 : i32
    %c0_i32_1 = arith.constant 0 : i32
    return %arg1, %c0_i32, %c0_i32_0 : i32, i32, i32
  }
  func.func @transform_11(%arg0: i32, %arg1: i32) -> (i32, i32, i32) {
    %c0_i32 = arith.constant 0 : i32
    %c0_i32_0 = arith.constant 0 : i32
    %c0_i32_1 = arith.constant 0 : i32
    return %arg1, %c0_i32, %c0_i32_0 : i32, i32, i32
  }
  func.func @transform_12(%arg0: i32, %arg1: i32) -> (i32, i32, i32) {
    %c0_i32 = arith.constant 0 : i32
    %c0_i32_0 = arith.constant 0 : i32
    %c0_i32_1 = arith.constant 0 : i32
    return %arg1, %c0_i32, %c0_i32_0 : i32, i32, i32
  }
  func.func @transform_13(%arg0: i32, %arg1: i32) -> (i32, i32, i32) {
    %c0_i32 = arith.constant 0 : i32
    %c0_i32_0 = arith.constant 0 : i32
    %c0_i32_1 = arith.constant 0 : i32
    return %arg0, %c0_i32, %c0_i32_0 : i32, i32, i32
  }
  func.func @transform_14(%arg0: i32, %arg1: i32) -> (i32, i32, i32, i32, i32) {
    %c0_i32 = arith.constant 0 : i32
    %c0_i32_0 = arith.constant 0 : i32
    %c0_i32_1 = arith.constant 0 : i32
    %c0_i32_2 = arith.constant 0 : i32
    return %arg1, %arg0, %c0_i32, %c0_i32_0, %c0_i32_1 : i32, i32, i32, i32, i32
  }
}

module attributes {stable_mosaic.version = 11 : i64} {
  func.func @_head_kernel(%arg0: i32, %arg1: memref<2x8x32xf32, #tpu.memory_space<vmem>>, %arg2: memref<32x32xbf16, #tpu.memory_space<vmem>>, %arg3: memref<1x32xf32, #tpu.memory_space<vmem>>, %arg4: memref<32x128xbf16, #tpu.memory_space<vmem>>, %arg5: memref<1x128xf32, #tpu.memory_space<vmem>>, %arg6: memref<2x128xf32, #tpu.memory_space<vmem>>) attributes {dimension_semantics = [#tpu.dimension_semantics<parallel>], iteration_bounds = array<i64: 1>, scalar_prefetch = 0 : i64, scratch_operands = 0 : i64, tpu.core_type = #tpu.core_type<tc>, window_params = [{transform_indices = @transform_0, window_bounds = array<i64: 2, 8, 32>}, {pipeline_mode = #tpu.pipeline_mode<synchronous>, transform_indices = @transform_1, window_bounds = array<i64: 32, 32>}, {pipeline_mode = #tpu.pipeline_mode<synchronous>, transform_indices = @transform_2, window_bounds = array<i64: 1, 32>}, {pipeline_mode = #tpu.pipeline_mode<synchronous>, transform_indices = @transform_3, window_bounds = array<i64: 32, 128>}, {pipeline_mode = #tpu.pipeline_mode<synchronous>, transform_indices = @transform_4, window_bounds = array<i64: 1, 128>}, {transform_indices = @transform_5, window_bounds = array<i64: 2, 128>}]} {
    %c0 = arith.constant 0 : index
    %c0_0 = arith.constant 0 : index
    %c0_1 = arith.constant 0 : index
    %0 = vector.load %arg1[%c0, %c0_0, %c0_1] : memref<2x8x32xf32, #tpu.memory_space<vmem>>, vector<2x8x32xf32>
    %cst = arith.constant dense<0.000000e+00> : vector<2x32xf32>
    %1 = vector.multi_reduction <add>, %0, %cst [1] : vector<2x8x32xf32> to vector<2x32xf32>
    %cst_2 = arith.constant 8.000000e+00 : f32
    %2 = vector.broadcast %cst_2 : f32 to vector<2x32xf32>
    %3 = arith.divf %1, %2 : vector<2x32xf32>
    %4 = arith.truncf %3 : vector<2x32xf32> to vector<2x32xbf16>
    %c0_3 = arith.constant 0 : index
    %c0_4 = arith.constant 0 : index
    %5 = vector.load %arg2[%c0_3, %c0_4] : memref<32x32xbf16, #tpu.memory_space<vmem>>, vector<32x32xbf16>
    %cst_5 = arith.constant dense<0.000000e+00> : vector<2x32xf32>
    %6 = tpu.matmul %4, %5, %cst_5 {dimension_numbers = #tpu.dot_dimension_numbers<[1], [0], [0], [1], [0, 0, 1, 1], [], []>} : vector<2x32xbf16>, vector<32x32xbf16>, vector<2x32xf32> -> vector<2x32xf32>
    %c0_6 = arith.constant 0 : index
    %c0_7 = arith.constant 0 : index
    %7 = vector.load %arg3[%c0_6, %c0_7] : memref<1x32xf32, #tpu.memory_space<vmem>>, vector<1x32xf32>
    %8 = vector.broadcast %7 : vector<1x32xf32> to vector<2x32xf32>
    %9 = arith.addf %6, %8 : vector<2x32xf32>
    %cst_8 = arith.constant 0.000000e+00 : f32
    %10 = vector.broadcast %cst_8 : f32 to vector<2x32xf32>
    %11 = arith.maximumf %9, %10 : vector<2x32xf32>
    %12 = arith.truncf %11 : vector<2x32xf32> to vector<2x32xbf16>
    %c0_9 = arith.constant 0 : index
    %c0_10 = arith.constant 0 : index
    %13 = vector.load %arg4[%c0_9, %c0_10] : memref<32x128xbf16, #tpu.memory_space<vmem>>, vector<32x128xbf16>
    %cst_11 = arith.constant dense<0.000000e+00> : vector<2x128xf32>
    %14 = tpu.matmul %12, %13, %cst_11 {dimension_numbers = #tpu.dot_dimension_numbers<[1], [0], [0], [1], [0, 0, 1, 1], [], []>} : vector<2x32xbf16>, vector<32x128xbf16>, vector<2x128xf32> -> vector<2x128xf32>
    %c0_12 = arith.constant 0 : index
    %c0_13 = arith.constant 0 : index
    %15 = vector.load %arg5[%c0_12, %c0_13] : memref<1x128xf32, #tpu.memory_space<vmem>>, vector<1x128xf32>
    %16 = vector.broadcast %15 : vector<1x128xf32> to vector<2x128xf32>
    %17 = arith.addf %14, %16 : vector<2x128xf32>
    %c0_14 = arith.constant 0 : index
    %c0_15 = arith.constant 0 : index
    %18 = vector.load %arg6[%c0_14, %c0_15] : memref<2x128xf32, #tpu.memory_space<vmem>>, vector<2x128xf32>
    tpu.vector_store %arg6[%c0_14, %c0_15], %17 {strides = array<i32>} : memref<2x128xf32, #tpu.memory_space<vmem>>, vector<2x128xf32>,
    return
  }
  func.func @transform_0(%arg0: i32) -> (i32, i32, i32) {
    %c0_i32 = arith.constant 0 : i32
    %c0_i32_0 = arith.constant 0 : i32
    %c0_i32_1 = arith.constant 0 : i32
    return %arg0, %c0_i32, %c0_i32_0 : i32, i32, i32
  }
  func.func @transform_1(%arg0: i32) -> (i32, i32) {
    %c0_i32 = arith.constant 0 : i32
    %c0_i32_0 = arith.constant 0 : i32
    %c0_i32_1 = arith.constant 0 : i32
    return %c0_i32, %c0_i32_0 : i32, i32
  }
  func.func @transform_2(%arg0: i32) -> (i32, i32) {
    %c0_i32 = arith.constant 0 : i32
    %c0_i32_0 = arith.constant 0 : i32
    %c0_i32_1 = arith.constant 0 : i32
    return %c0_i32, %c0_i32_0 : i32, i32
  }
  func.func @transform_3(%arg0: i32) -> (i32, i32) {
    %c0_i32 = arith.constant 0 : i32
    %c0_i32_0 = arith.constant 0 : i32
    %c0_i32_1 = arith.constant 0 : i32
    return %c0_i32, %c0_i32_0 : i32, i32
  }
  func.func @transform_4(%arg0: i32) -> (i32, i32) {
    %c0_i32 = arith.constant 0 : i32
    %c0_i32_0 = arith.constant 0 : i32
    %c0_i32_1 = arith.constant 0 : i32
    return %c0_i32, %c0_i32_0 : i32, i32
  }
  func.func @transform_5(%arg0: i32) -> (i32, i32) {
    %c0_i32 = arith.constant 0 : i32
    %c0_i32_0 = arith.constant 0 : i32
    return %arg0, %c0_i32 : i32, i32
  }
}

</mosaic_0001>

<llo_original>
// kernel: classifier_forward.3
$region0: #{classifier_forward.3}
  #allocation0 [shape = 'u32[]', space=smem, size = 0x4, offset = 0x4, fixed_abs, tag = 'smem constant byte address 0x4 - core index']
  #allocation1 [shape = 'u32[144,128]{1,0:T(1,128)}', space=vmem, size = 0x12000, scoped, tag = 'internal scratch']
  %s0 = inlined_call_operand.vmem [shape: f32[2,8,32], index: 0, kind: input, shape index: {}]
  %s1 = inlined_call_operand.vmem [shape: bf16[32,32], index: 1, kind: input, shape index: {}]
  %s2 = inlined_call_operand.vmem [shape: f32[1,32], index: 2, kind: input, shape index: {}]
  %s3 = inlined_call_operand.vmem [shape: bf16[32,128], index: 3, kind: input, shape index: {}]
  %s4 = inlined_call_operand.vmem [shape: f32[1,128], index: 4, kind: input, shape index: {}]
  %s5 = inlined_call_operand.hbm [shape: f32[2,128], index: 5, kind: output, shape index: {}]
  %s6 = sld [smem:[#allocation0]]
  $region30: #{classifier_forward.3} parent=0
    _
  %s8 = ssub.s32 1, %s6
  %s9 = scalar_select 0, %s8, %s6
  $region1: #{classifier_forward.3} parent=0
    #allocation2 [shape = 'u8[1024]{0}', space=vmem, size = 0x400, scoped, tag = 'output window, operand 0, single buffered']
    #allocation3 [shape = 's32[1]{0}', space=sflag, size = 0x4, scoped, tag = 'scoped memory for classifier_forward.3']
    %10 = vsyncpa [#allocation3], 0
    // Predicated region
    $region2: #{classifier_forward.3} parent=1 // pred_check
      _
    $region3: #{classifier_forward.3} parent=1 // pred_check_branch
      %12 = sbr.rel (0) target = $region5
    $region4: #{classifier_forward.3} parent=1 // pred_region
      _
    $region5: #{classifier_forward.3} parent=1 // pred_fallthru
      _
    // Predicated region
    $region6: #{classifier_forward.3} parent=1 // pred_check
      _
    $region7: #{classifier_forward.3} parent=1 // pred_check_branch
      %14 = sbr.rel (0) target = $region9
    $region8: #{classifier_forward.3} parent=1 // pred_region
      _
    $region9: #{classifier_forward.3} parent=1 // pred_fallthru
      _
    // Predicated region
    $region10: #{classifier_forward.3} parent=1 // pred_check
      _
    $region11: #{classifier_forward.3} parent=1 // pred_check_branch
      %16 = sbr.rel (0) target = $region13
    $region12: #{classifier_forward.3} parent=1 // pred_region
      _
    $region13: #{classifier_forward.3} parent=1 // pred_fallthru
      _
    // Predicated region
    $region14: #{classifier_forward.3} parent=1 // pred_check
      _
    $region15: #{classifier_forward.3} parent=1 // pred_check_branch
      %18 = sbr.rel (0) target = $region17
    $region16: #{classifier_forward.3} parent=1 // pred_region
      _
    $region17: #{classifier_forward.3} parent=1 // pred_fallthru
      _
    // Predicated region
    $region18: #{classifier_forward.3} parent=1 // pred_check
      _
    $region19: #{classifier_forward.3} parent=1 // pred_check_branch
      %20 = sbr.rel (0) target = $region21
    $region20: #{classifier_forward.3} parent=1 // pred_region
      _
    $region21: #{classifier_forward.3} parent=1 // pred_fallthru
      _
    %v22 = vld [vmem:[%s0] sm:$0xff]
    %v23 = vld [vmem:[%s0 + $0x8] sm:$0xff]
    %vm24 = vcmask 261120
    %v25 = vsel %vm24, %v22, 0.0
    %v26 = vrot.slane %v25, 4
    %v27 = vadd.f32 %v25, %v26
    %v28 = vrot.slane %v27, 2
    %v29 = vadd.f32 %v27, %v28
    %v30 = vrot.slane %v29, 1
    %v31 = vadd.f32 %v29, %v30
    %v32 = vsel %vm24, %v23, 0.0
    %v33 = vrot.slane %v32, 4
    %v34 = vadd.f32 %v32, %v33
    %v35 = vrot.slane %v34, 2
    %v36 = vadd.f32 %v34, %v35
    %v37 = vrot.slane %v36, 1
    %v38 = vadd.f32 %v36, %v37
    %v39 = vrcp.pop 8.0
    %v40 = vmul.f32 %v31, %v39
    %v41 = vmul.f32 %v38, %v39
    %v42 = vpack.c.bf16 %v40, %v40
    %v43 = vpack.c.bf16 %v41, %v41
    %v44 = vld [vmem:[%s1] sm:$0xf]
    %v45 = vld [vmem:[%s1 + $0x4] sm:$0xf]
    %v46 = vld [vmem:[%s1 + $0x8] sm:$0xf]
    %v47 = vld [vmem:[%s1 + $0xc] sm:$0xf]
    %v48 = vld [vmem:[%s2] sm:$0x1]
    %v50 = vlaneseq
    %v51 = vshrl.u32 %v50, 7
    %v52 = vsub.s32 0, %v51
    %v53 = vrot.slane %v48, %v52
    %v57 = vunpack.c.l.b16 %v42
    %v58 = vunpack.c.l.b16 %v43
    %vm59 = vcmask 1041409
    %v60 = vsel %vm59, %v58, %v57
    %v61 = vpack.c.b16 %v60, %v60
    %v66 = vunpack.c.l.b16 %v44
    %v67 = vunpack.c.l.b16 %v45
    %v68 = vunpack.c.l.b16 %v46
    %v69 = vunpack.c.l.b16 %v47
    %v70 = vpack.c.b16 %v67, %v66
    %v71 = vpack.c.b16 %v69, %v68
    %v75 = vsel %vm24, %v61, 0
    %77 = vmatprep.subr.bf16.mxu0 0
    %78 = vmatpush1.bf16.msra.mxu0 %v70
    %79 = vmatprep.subr.bf16.mxu0 0
    %80 = vmatpush1.bf16.msra.mxu0 %v71
    %81 = vmatprep.subr.bf16.mxu0 0
    %82 = vmatpush1.bf16.msra.mxu0 0
    %83 = vmatprep.subr.bf16.mxu0 0
    %84 = vmatpush1.bf16.msra.mxu0 0
    %85 = vmatprep.subr.bf16.mxu0 0
    %86 = vmatpush1.bf16.msra.mxu0 0
    %87 = vmatprep.subr.bf16.mxu0 0
    %88 = vmatpush1.bf16.msra.mxu0 0
    %89 = vmatprep.subr.bf16.mxu0 0
    %90 = vmatpush1.bf16.msra.mxu0 0
    %91 = vmatprep.subr.bf16.mxu0 0
    %92 = vmatpush1.bf16.msra.mxu0 0
    %93 = vmatprep.subr.bf16.mxu0 0
    %94 = vmatpush1.bf16.msra.mxu0 0
    %95 = vmatprep.subr.bf16.mxu0 0
    %96 = vmatpush1.bf16.msra.mxu0 0
    %97 = vmatprep.subr.bf16.mxu0 0
    %98 = vmatpush1.bf16.msra.mxu0 0
    %99 = vmatprep.subr.bf16.mxu0 0
    %100 = vmatpush1.bf16.msra.mxu0 0
    %101 = vmatprep.subr.bf16.mxu0 0
    %102 = vmatpush1.bf16.msra.mxu0 0
    %103 = vmatprep.subr.bf16.mxu0 0
    %104 = vmatpush1.bf16.msra.mxu0 0
    %105 = vmatprep.subr.bf16.mxu0 0
    %106 = vmatpush1.bf16.msra.mxu0 0
    %107 = vmatprep.subr.bf16.mxu0 0
    %108 = vmatpush1.bf16.msra.mxu0 0
    %109 = vmatprep.mubr.bf16.mxu0 0
    %110 = vmatmul.mubr.bf16.gmra.mrb[0].mxu0 %v75
    %v111 = vpop.f32.mrb[0].mxu0
    %v112 = vadd.f32 %v53, %v111
    %v113 = vpop.f32.mrb[0].mxu0
    %v114 = vpop.f32.mrb[0].mxu0
    %v115 = vpop.f32.mrb[0].mxu0
    %116 = vdwg.mxu0
    %v117 = vmax.f32 %v112, 0.0
    %v118 = vpack.c.bf16 %v117, %v117
    %v119 = vld [vmem:[%s3] sm:$0xf]
    %v120 = vld [vmem:[%s3 + $0x4] sm:$0xf]
    %v121 = vld [vmem:[%s3 + $0x8] sm:$0xf]
    %v122 = vld [vmem:[%s3 + $0xc] sm:$0xf]
    %v123 = vld [vmem:[%s4] sm:$0x1]
    %v125 = vlaneseq
    %v126 = vshrl.u32 %v125, 7
    %v127 = vsub.s32 0, %v126
    %v128 = vrot.slane %v123, %v127
    %v134 = vunpack.c.l.b16 %v119
    %v135 = vunpack.c.l.b16 %v120
    %v136 = vunpack.c.l.b16 %v121
    %v137 = vunpack.c.l.b16 %v122
    %v138 = vpack.c.b16 %v135, %v134
    %v139 = vpack.c.b16 %v137, %v136
    %v143 = vsel %vm24, %v118, 0
    %145 = vmatprep.subr.bf16.mxu0 0
    %146 = vmatpush1.bf16.msra.mxu0 %v138
    %147 = vmatprep.subr.bf16.mxu0 0
    %148 = vmatpush1.bf16.msra.mxu0 %v139
    %149 = vmatprep.subr.bf16.mxu0 0
    %150 = vmatpush1.bf16.msra.mxu0 0
    %151 = vmatprep.subr.bf16.mxu0 0
    %152 = vmatpush1.bf16.msra.mxu0 0
    %153 = vmatprep.subr.bf16.mxu0 0
    %154 = vmatpush1.bf16.msra.mxu0 0
    %155 = vmatprep.subr.bf16.mxu0 0
    %156 = vmatpush1.bf16.msra.mxu0 0
    %157 = vmatprep.subr.bf16.mxu0 0
    %158 = vmatpush1.bf16.msra.mxu0 0
    %159 = vmatprep.subr.bf16.mxu0 0
    %160 = vmatpush1.bf16.msra.mxu0 0
    %161 = vmatprep.subr.bf16.mxu0 0
    %162 = vmatpush1.bf16.msra.mxu0 0
    %163 = vmatprep.subr.bf16.mxu0 0
    %164 = vmatpush1.bf16.msra.mxu0 0
    %165 = vmatprep.subr.bf16.mxu0 0
    %166 = vmatpush1.bf16.msra.mxu0 0
    %167 = vmatprep.subr.bf16.mxu0 0
    %168 = vmatpush1.bf16.msra.mxu0 0
    %169 = vmatprep.subr.bf16.mxu0 0
    %170 = vmatpush1.bf16.msra.mxu0 0
    %171 = vmatprep.subr.bf16.mxu0 0
    %172 = vmatpush1.bf16.msra.mxu0 0
    %173 = vmatprep.subr.bf16.mxu0 0
    %174 = vmatpush1.bf16.msra.mxu0 0
    %175 = vmatprep.subr.bf16.mxu0 0
    %176 = vmatpush1.bf16.msra.mxu0 0
    %177 = vmatprep.mubr.bf16.mxu0 0
    %178 = vmatmul.mubr.bf16.gmra.mrb[0].mxu0 %v143
    %v179 = vpop.f32.mrb[0].mxu0
    %v180 = vadd.f32 %v128, %v179
    %v181 = vpop.f32.mrb[0].mxu0
    %v182 = vpop.f32.mrb[0].mxu0
    %v183 = vpop.f32.mrb[0].mxu0
    %184 = vdwg.mxu0
    %185 = vst [vmem:[#allocation2] sm:$0x3] %v180
    // Predicated region
    $region22: #{classifier_forward.3} parent=1 // pred_check
      _
    $region23: #{classifier_forward.3} parent=1 // pred_check_branch
      %187 = sbr.rel (0) target = $region25
    $region24: #{classifier_forward.3} parent=1 // pred_region
      %s189 = ssub.s32 32, 32
      %190 = vsyncadd [#allocation3], %s189
      %s192 = sshll.u32 [#allocation2], 4
      %s193 = int_to_ptr.vmem [resolvable:$true] %s192
      %195 = dma.vmem_to_hbm [thread:$0]  %s193, 32, %s5, [#allocation3]
    $region25: #{classifier_forward.3} parent=1 // pred_fallthru
      _
    // Predicated region
    $region26: #{classifier_forward.3} parent=1 // pred_check
      _
    $region27: #{classifier_forward.3} parent=1 // pred_check_branch
      %197 = sbr.rel (0) target = $region29
    $region28: #{classifier_forward.3} parent=1 // pred_region
      %198 = dma.done [#allocation3], 32
    $region29: #{classifier_forward.3} parent=1 // pred_fallthru
      _
    %199 = vsyncpa [#allocation3], 1

// kernel: classifier_forward.2
$region0: #{classifier_forward.2}
  #allocation0 [shape = 'u32[]', space=smem, size = 0x4, offset = 0x4, fixed_abs, tag = 'smem constant byte address 0x4 - core index']
  #allocation1 [shape = 'u32[144,128]{1,0:T(1,128)}', space=vmem, size = 0x12000, scoped, tag = 'internal scratch']
  #allocation2 [shape = 'f32[8,32]{1,0:T(8,128)}', space=vmem, size = 0x1000, scoped, tag = 'scratch operand']
  %s0 = inlined_call_operand.vmem [shape: f32[2,8,32], index: 0, kind: input, shape index: {}]
  %s1 = inlined_call_operand.vmem [shape: f32[2,1,32], index: 1, kind: input, shape index: {}]
  %s2 = inlined_call_operand.vmem [shape: f32[2,1,32], index: 2, kind: input, shape index: {}]
  %s3 = inlined_call_operand.vmem [shape: bf16[2,32,96], index: 3, kind: input, shape index: {}]
  %s4 = inlined_call_operand.vmem [shape: f32[2,1,96], index: 4, kind: input, shape index: {}]
  %s5 = inlined_call_operand.vmem [shape: bf16[2,32,32], index: 5, kind: input, shape index: {}]
  %s6 = inlined_call_operand.vmem [shape: f32[2,1,32], index: 6, kind: input, shape index: {}]
  %s7 = inlined_call_operand.vmem [shape: f32[2,1,32], index: 7, kind: input, shape index: {}]
  %s8 = inlined_call_operand.vmem [shape: f32[2,1,32], index: 8, kind: input, shape index: {}]
  %s9 = inlined_call_operand.vmem [shape: bf16[2,32,128], index: 9, kind: input, shape index: {}]
  %s10 = inlined_call_operand.vmem [shape: f32[2,1,128], index: 10, kind: input, shape index: {}]
  %s11 = inlined_call_operand.vmem [shape: bf16[2,128,32], index: 11, kind: input, shape index: {}]
  %s12 = inlined_call_operand.vmem [shape: f32[2,1,32], index: 12, kind: input, shape index: {}]
  %s13 = inlined_call_operand.vmem [shape: f32[2,8,32], index: 13, kind: output, shape index: {0}]
  %s14 = inlined_call_operand.hbm [shape: bf16[2,2,2,8,8], index: 14, kind: output, shape index: {1}]
  %15 = xla_tuple %s13, %s14
  %s16 = sld [smem:[#allocation0]]
  $region101: #{classifier_forward.2} parent=0
    _
  %s18 = ssub.s32 1, %s16
  %s19 = scalar_select 0, %s18, %s16
  $region1: #{classifier_forward.2} parent=0
    #allocation3 [shape = 'u8[8192]{0}', space=vmem, size = 0x2000, scoped, tag = 'output window, operand 1']
    #allocation4 [shape = 's32[2]{0}', space=sflag, size = 0x8, scoped, tag = 'scoped memory for classifier_forward.2']
    %20 = vsyncpa [#allocation4], 0
    %s21 = scalar_lea.sflag [#allocation4], 1
    %22 = vsyncpa %s21, 0
    loop: start=0, step=1, limit=6
    $region2: #{classifier_forward.2} parent=1 // loop_pre_header
      _
    $region3: #{classifier_forward.2} parent=1 // loop_header
      %s24 = sphi 0, %s28
      %p25 = scmp.ge.s32.totalorder %s24, 6
      %s31 = sphi 0, %s43
      %s32 = sphi 0, %s39
      %s33 = sphi 0, %s31
      %s34 = sphi 0, %s32
      %s35 = sphi 0, %s33
      %s36 = sphi 0, %s34
      %s46 = sphi 0, %s48
      %s49 = sphi 0, %s46
      %s50 = sphi 0, %s49
      %s66 = sphi 0, %s50
      %s72 = sphi 0, %s74
      %s75 = sphi 0, %s72
      %s76 = sphi 0, %s75
      %s92 = sphi 0, %s76
      %s98 = sphi 0, %s100
      %s101 = sphi 0, %s98
      %s102 = sphi 0, %s101
      %s118 = sphi 0, %s102
      %s124 = sphi 0, %s126
      %s127 = sphi 0, %s124
      %s128 = sphi 0, %s127
      %s144 = sphi 0, %s128
      %s150 = sphi 0, %s152
      %s153 = sphi 0, %s150
      %s154 = sphi 0, %s153
      %s170 = sphi 0, %s154
      %s176 = sphi 0, %s178
      %s179 = sphi 0, %s176
      %s180 = sphi 0, %s179
      %s196 = sphi 0, %s180
      %s202 = sphi 0, %s204
      %s205 = sphi 0, %s202
      %s206 = sphi 0, %s205
      %s222 = sphi 0, %s206
      %s228 = sphi 0, %s230
      %s231 = sphi 0, %s228
      %s232 = sphi 0, %s231
      %s248 = sphi 0, %s232
      %s254 = sphi 0, %s256
      %s257 = sphi 0, %s254
      %s258 = sphi 0, %s257
      %s274 = sphi 0, %s258
      %s280 = sphi 0, %s282
      %s283 = sphi 0, %s280
      %s284 = sphi 0, %s283
      %s300 = sphi 0, %s284
      %s306 = sphi 0, %s308
      %s309 = sphi 0, %s306
      %s310 = sphi 0, %s309
      %s326 = sphi 0, %s310
      %s332 = sphi 0, %s334
      %s335 = sphi 0, %s332
      %s336 = sphi 0, %s335
      %s352 = sphi 0, %s336
      %s358 = sphi 0, %s360
      %s361 = sphi 0, %s358
      %s362 = sphi 0, %s361
      %s378 = sphi 0, %s362
      %s384 = sphi 0, %s386
      %s387 = sphi 0, %s384
      %s388 = sphi 0, %s387
      %s404 = sphi 0, %s388
      %s412 = sphi 0, %s414
      %s415 = sphi 0, %s412
      %s416 = sphi 0, %s415
      %s432 = sphi 0, %s416
    $region4: #{classifier_forward.2} parent=1 // loop_header_branch
      %27 = sbr.rel (%p25) target = $region8
    $region5: #{classifier_forward.2} parent=1 // loop_body
      %s29 = ssub.s32 %s24, 1
      %s30 = ssub.s32 %s24, 2
      %s37 = sadd.s32 1, %s32
      %p38 = scmp.ge.s32.totalorder %s37, 2
      %s39 = scalar_select %p38, 0, %s37
      %s40 = sadd.s32 1, %s31
      %s41 = scalar_select %p38, %s40, %s31
      %p42 = scmp.ge.s32.totalorder %s41, 2
      %s43 = scalar_select %p42, 0, %s41
      %s44 = ssub.s32 %s31, %s43
      %p45 = scmp.eq.s32.totalorder %s44, 0
      %s47 = sadd.s32 %s46, 1
      %s48 = scalar_select %p45, %s46, %s47
      %p51 = pneg %p45
      %p52 = scmp.eq.s32.totalorder %s24, 3
      %p53 = por %p51, %p52
      %p54 = scmp.ne.s32.totalorder %s46, %s49
      %p55 = scmp.eq.s32.totalorder %s24, 0
      %p56 = por %p54, %p55
      %p57 = scmp.ne.s32.totalorder %s46, %s49
      %p58 = scmp.eq.s32.totalorder %s29, 3
      %p59 = por %p57, %p58
      %p60 = scmp.ne.s32.totalorder %s49, %s50
      %p61 = scmp.eq.s32.totalorder %s29, 0
      %p62 = por %p60, %p61
      %p63 = scmp.ne.s32.totalorder %s49, %s50
      %p64 = scmp.eq.s32.totalorder %s30, 3
      %p65 = por %p63, %p64
      %p67 = scmp.ne.s32.totalorder %s50, %s66
      %p68 = scmp.eq.s32.totalorder %s30, 0
      %p69 = por %p67, %p68
      %s70 = ssub.s32 %s32, %s39
      %p71 = scmp.eq.s32.totalorder %s70, 0
      %s73 = sadd.s32 %s72, 1
      %s74 = scalar_select %p71, %s72, %s73
      %p77 = pneg %p71
      %p78 = scmp.eq.s32.totalorder %s24, 3
      %p79 = por %p77, %p78
      %p80 = scmp.ne.s32.totalorder %s72, %s75
      %p81 = scmp.eq.s32.totalorder %s24, 0
      %p82 = por %p80, %p81
      %p83 = scmp.ne.s32.totalorder %s72, %s75
      %p84 = scmp.eq.s32.totalorder %s29, 3
      %p85 = por %p83, %p84
      %p86 = scmp.ne.s32.totalorder %s75, %s76
      %p87 = scmp.eq.s32.totalorder %s29, 0
      %p88 = por %p86, %p87
      %p89 = scmp.ne.s32.totalorder %s75, %s76
      %p90 = scmp.eq.s32.totalorder %s30, 3
      %p91 = por %p89, %p90
      %p93 = scmp.ne.s32.totalorder %s76, %s92
      %p94 = scmp.eq.s32.totalorder %s30, 0
      %p95 = por %p93, %p94
      %s96 = ssub.s32 %s32, %s39
      %p97 = scmp.eq.s32.totalorder %s96, 0
      %s99 = sadd.s32 %s98, 1
      %s100 = scalar_select %p97, %s98, %s99
      %p103 = pneg %p97
      %p104 = scmp.eq.s32.totalorder %s24, 3
      %p105 = por %p103, %p104
      %p106 = scmp.ne.s32.totalorder %s98, %s101
      %p107 = scmp.eq.s32.totalorder %s24, 0
      %p108 = por %p106, %p107
      %p109 = scmp.ne.s32.totalorder %s98, %s101
      %p110 = scmp.eq.s32.totalorder %s29, 3
      %p111 = por %p109, %p110
      %p112 = scmp.ne.s32.totalorder %s101, %s102
      %p113 = scmp.eq.s32.totalorder %s29, 0
      %p114 = por %p112, %p113
      %p115 = scmp.ne.s32.totalorder %s101, %s102
      %p116 = scmp.eq.s32.totalorder %s30, 3
      %p117 = por %p115, %p116
      %p119 = scmp.ne.s32.totalorder %s102, %s118
      %p120 = scmp.eq.s32.totalorder %s30, 0
      %p121 = por %p119, %p120
      %s122 = ssub.s32 %s32, %s39
      %p123 = scmp.eq.s32.totalorder %s122, 0
      %s125 = sadd.s32 %s124, 1
      %s126 = scalar_select %p123, %s124, %s125
      %p129 = pneg %p123
      %p130 = scmp.eq.s32.totalorder %s24, 3
      %p131 = por %p129, %p130
      %p132 = scmp.ne.s32.totalorder %s124, %s127
      %p133 = scmp.eq.s32.totalorder %s24, 0
      %p134 = por %p132, %p133
      %p135 = scmp.ne.s32.totalorder %s124, %s127
      %p136 = scmp.eq.s32.totalorder %s29, 3
      %p137 = por %p135, %p136
      %p138 = scmp.ne.s32.totalorder %s127, %s128
      %p139 = scmp.eq.s32.totalorder %s29, 0
      %p140 = por %p138, %p139
      %p141 = scmp.ne.s32.totalorder %s127, %s128
      %p142 = scmp.eq.s32.totalorder %s30, 3
      %p143 = por %p141, %p142
      %p145 = scmp.ne.s32.totalorder %s128, %s144
      %p146 = scmp.eq.s32.totalorder %s30, 0
      %p147 = por %p145, %p146
      %s148 = ssub.s32 %s32, %s39
      %p149 = scmp.eq.s32.totalorder %s148, 0
      %s151 = sadd.s32 %s150, 1
      %s152 = scalar_select %p149, %s150, %s151
      %p155 = pneg %p149
      %p156 = scmp.eq.s32.totalorder %s24, 3
      %p157 = por %p155, %p156
      %p158 = scmp.ne.s32.totalorder %s150, %s153
      %p159 = scmp.eq.s32.totalorder %s24, 0
      %p160 = por %p158, %p159
      %p161 = scmp.ne.s32.totalorder %s150, %s153
      %p162 = scmp.eq.s32.totalorder %s29, 3
      %p163 = por %p161, %p162
      %p164 = scmp.ne.s32.totalorder %s153, %s154
      %p165 = scmp.eq.s32.totalorder %s29, 0
      %p166 = por %p164, %p165
      %p167 = scmp.ne.s32.totalorder %s153, %s154
      %p168 = scmp.eq.s32.totalorder %s30, 3
      %p169 = por %p167, %p168
      %p171 = scmp.ne.s32.totalorder %s154, %s170
      %p172 = scmp.eq.s32.totalorder %s30, 0
      %p173 = por %p171, %p172
      %s174 = ssub.s32 %s32, %s39
      %p175 = scmp.eq.s32.totalorder %s174, 0
      %s177 = sadd.s32 %s176, 1
      %s178 = scalar_select %p175, %s176, %s177
      %p181 = pneg %p175
      %p182 = scmp.eq.s32.totalorder %s24, 3
      %p183 = por %p181, %p182
      %p184 = scmp.ne.s32.totalorder %s176, %s179
      %p185 = scmp.eq.s32.totalorder %s24, 0
      %p186 = por %p184, %p185
      %p187 = scmp.ne.s32.totalorder %s176, %s179
      %p188 = scmp.eq.s32.totalorder %s29, 3
      %p189 = por %p187, %p188
      %p190 = scmp.ne.s32.totalorder %s179, %s180
      %p191 = scmp.eq.s32.totalorder %s29, 0
      %p192 = por %p190, %p191
      %p193 = scmp.ne.s32.totalorder %s179, %s180
      %p194 = scmp.eq.s32.totalorder %s30, 3
      %p195 = por %p193, %p194
      %p197 = scmp.ne.s32.totalorder %s180, %s196
      %p198 = scmp.eq.s32.totalorder %s30, 0
      %p199 = por %p197, %p198
      %s200 = ssub.s32 %s32, %s39
      %p201 = scmp.eq.s32.totalorder %s200, 0
      %s203 = sadd.s32 %s202, 1
      %s204 = scalar_select %p201, %s202, %s203
      %p207 = pneg %p201
      %p208 = scmp.eq.s32.totalorder %s24, 3
      %p209 = por %p207, %p208
      %p210 = scmp.ne.s32.totalorder %s202, %s205
      %p211 = scmp.eq.s32.totalorder %s24, 0
      %p212 = por %p210, %p211
      %p213 = scmp.ne.s32.totalorder %s202, %s205
      %p214 = scmp.eq.s32.totalorder %s29, 3
      %p215 = por %p213, %p214
      %p216 = scmp.ne.s32.totalorder %s205, %s206
      %p217 = scmp.eq.s32.totalorder %s29, 0
      %p218 = por %p216, %p217
      %p219 = scmp.ne.s32.totalorder %s205, %s206
      %p220 = scmp.eq.s32.totalorder %s30, 3
      %p221 = por %p219, %p220
      %p223 = scmp.ne.s32.totalorder %s206, %s222
      %p224 = scmp.eq.s32.totalorder %s30, 0
      %p225 = por %p223, %p224
      %s226 = ssub.s32 %s32, %s39
      %p227 = scmp.eq.s32.totalorder %s226, 0
      %s229 = sadd.s32 %s228, 1
      %s230 = scalar_select %p227, %s228, %s229
      %p233 = pneg %p227
      %p234 = scmp.eq.s32.totalorder %s24, 3
      %p235 = por %p233, %p234
      %p236 = scmp.ne.s32.totalorder %s228, %s231
      %p237 = scmp.eq.s32.totalorder %s24, 0
      %p238 = por %p236, %p237
      %p239 = scmp.ne.s32.totalorder %s228, %s231
      %p240 = scmp.eq.s32.totalorder %s29, 3
      %p241 = por %p239, %p240
      %p242 = scmp.ne.s32.totalorder %s231, %s232
      %p243 = scmp.eq.s32.totalorder %s29, 0
      %p244 = por %p242, %p243
      %p245 = scmp.ne.s32.totalorder %s231, %s232
      %p246 = scmp.eq.s32.totalorder %s30, 3
      %p247 = por %p245, %p246
      %p249 = scmp.ne.s32.totalorder %s232, %s248
      %p250 = scmp.eq.s32.totalorder %s30, 0
      %p251 = por %p249, %p250
      %s252 = ssub.s32 %s32, %s39
      %p253 = scmp.eq.s32.totalorder %s252, 0
      %s255 = sadd.s32 %s254, 1
      %s256 = scalar_select %p253, %s254, %s255
      %p259 = pneg %p253
      %p260 = scmp.eq.s32.totalorder %s24, 3
      %p261 = por %p259, %p260
      %p262 = scmp.ne.s32.totalorder %s254, %s257
      %p263 = scmp.eq.s32.totalorder %s24, 0
      %p264 = por %p262, %p263
      %p265 = scmp.ne.s32.totalorder %s254, %s257
      %p266 = scmp.eq.s32.totalorder %s29, 3
      %p267 = por %p265, %p266
      %p268 = scmp.ne.s32.totalorder %s257, %s258
      %p269 = scmp.eq.s32.totalorder %s29, 0
      %p270 = por %p268, %p269
      %p271 = scmp.ne.s32.totalorder %s257, %s258
      %p272 = scmp.eq.s32.totalorder %s30, 3
      %p273 = por %p271, %p272
      %p275 = scmp.ne.s32.totalorder %s258, %s274
      %p276 = scmp.eq.s32.totalorder %s30, 0
      %p277 = por %p275, %p276
      %s278 = ssub.s32 %s32, %s39
      %p279 = scmp.eq.s32.totalorder %s278, 0
      %s281 = sadd.s32 %s280, 1
      %s282 = scalar_select %p279, %s280, %s281
      %p285 = pneg %p279
      %p286 = scmp.eq.s32.totalorder %s24, 3
      %p287 = por %p285, %p286
      %p288 = scmp.ne.s32.totalorder %s280, %s283
      %p289 = scmp.eq.s32.totalorder %s24, 0
      %p290 = por %p288, %p289
      %p291 = scmp.ne.s32.totalorder %s280, %s283
      %p292 = scmp.eq.s32.totalorder %s29, 3
      %p293 = por %p291, %p292
      %p294 = scmp.ne.s32.totalorder %s283, %s284
      %p295 = scmp.eq.s32.totalorder %s29, 0
      %p296 = por %p294, %p295
      %p297 = scmp.ne.s32.totalorder %s283, %s284
      %p298 = scmp.eq.s32.totalorder %s30, 3
      %p299 = por %p297, %p298
      %p301 = scmp.ne.s32.totalorder %s284, %s300
      %p302 = scmp.eq.s32.totalorder %s30, 0
      %p303 = por %p301, %p302
      %s304 = ssub.s32 %s32, %s39
      %p305 = scmp.eq.s32.totalorder %s304, 0
      %s307 = sadd.s32 %s306, 1
      %s308 = scalar_select %p305, %s306, %s307
      %p311 = pneg %p305
      %p312 = scmp.eq.s32.totalorder %s24, 3
      %p313 = por %p311, %p312
      %p314 = scmp.ne.s32.totalorder %s306, %s309
      %p315 = scmp.eq.s32.totalorder %s24, 0
      %p316 = por %p314, %p315
      %p317 = scmp.ne.s32.totalorder %s306, %s309
      %p318 = scmp.eq.s32.totalorder %s29, 3
      %p319 = por %p317, %p318
      %p320 = scmp.ne.s32.totalorder %s309, %s310
      %p321 = scmp.eq.s32.totalorder %s29, 0
      %p322 = por %p320, %p321
      %p323 = scmp.ne.s32.totalorder %s309, %s310
      %p324 = scmp.eq.s32.totalorder %s30, 3
      %p325 = por %p323, %p324
      %p327 = scmp.ne.s32.totalorder %s310, %s326
      %p328 = scmp.eq.s32.totalorder %s30, 0
      %p329 = por %p327, %p328
      %s330 = ssub.s32 %s32, %s39
      %p331 = scmp.eq.s32.totalorder %s330, 0
      %s333 = sadd.s32 %s332, 1
      %s334 = scalar_select %p331, %s332, %s333
      %p337 = pneg %p331
      %p338 = scmp.eq.s32.totalorder %s24, 3
      %p339 = por %p337, %p338
      %p340 = scmp.ne.s32.totalorder %s332, %s335
      %p341 = scmp.eq.s32.totalorder %s24, 0
      %p342 = por %p340, %p341
      %p343 = scmp.ne.s32.totalorder %s332, %s335
      %p344 = scmp.eq.s32.totalorder %s29, 3
      %p345 = por %p343, %p344
      %p346 = scmp.ne.s32.totalorder %s335, %s336
      %p347 = scmp.eq.s32.totalorder %s29, 0
      %p348 = por %p346, %p347
      %p349 = scmp.ne.s32.totalorder %s335, %s336
      %p350 = scmp.eq.s32.totalorder %s30, 3
      %p351 = por %p349, %p350
      %p353 = scmp.ne.s32.totalorder %s336, %s352
      %p354 = scmp.eq.s32.totalorder %s30, 0
      %p355 = por %p353, %p354
      %s356 = ssub.s32 %s32, %s39
      %p357 = scmp.eq.s32.totalorder %s356, 0
      %s359 = sadd.s32 %s358, 1
      %s360 = scalar_select %p357, %s358, %s359
      %p363 = pneg %p357
      %p364 = scmp.eq.s32.totalorder %s24, 3
      %p365 = por %p363, %p364
      %p366 = scmp.ne.s32.totalorder %s358, %s361
      %p367 = scmp.eq.s32.totalorder %s24, 0
      %p368 = por %p366, %p367
      %p369 = scmp.ne.s32.totalorder %s358, %s361
      %p370 = scmp.eq.s32.totalorder %s29, 3
      %p371 = por %p369, %p370
      %p372 = scmp.ne.s32.totalorder %s361, %s362
      %p373 = scmp.eq.s32.totalorder %s29, 0
      %p374 = por %p372, %p373
      %p375 = scmp.ne.s32.totalorder %s361, %s362
      %p376 = scmp.eq.s32.totalorder %s30, 3
      %p377 = por %p375, %p376
      %p379 = scmp.ne.s32.totalorder %s362, %s378
      %p380 = scmp.eq.s32.totalorder %s30, 0
      %p381 = por %p379, %p380
      %s382 = ssub.s32 %s31, %s43
      %p383 = scmp.eq.s32.totalorder %s382, 0
      %s385 = sadd.s32 %s384, 1
      %s386 = scalar_select %p383, %s384, %s385
      %p389 = pneg %p383
      %p390 = scmp.eq.s32.totalorder %s24, 3
      %p391 = por %p389, %p390
      %p392 = scmp.ne.s32.totalorder %s384, %s387
      %p393 = scmp.eq.s32.totalorder %s24, 0
      %p394 = por %p392, %p393
      %p395 = scmp.ne.s32.totalorder %s384, %s387
      %p396 = scmp.eq.s32.totalorder %s29, 3
      %p397 = por %p395, %p396
      %p398 = scmp.ne.s32.totalorder %s387, %s388
      %p399 = scmp.eq.s32.totalorder %s29, 0
      %p400 = por %p398, %p399
      %p401 = scmp.ne.s32.totalorder %s387, %s388
      %p402 = scmp.eq.s32.totalorder %s30, 3
      %p403 = por %p401, %p402
      %p405 = scmp.ne.s32.totalorder %s388, %s404
      %p406 = scmp.eq.s32.totalorder %s30, 0
      %p407 = por %p405, %p406
      %s408 = ssub.s32 %s32, %s39
      %s409 = ssub.s32 %s31, %s43
      %s410 = sor.u32 %s408, %s409
      %p411 = scmp.eq.s32.totalorder %s410, 0
      %s413 = sadd.s32 %s412, 1
      %s414 = scalar_select %p411, %s412, %s413
      %p417 = pneg %p411
      %p418 = scmp.eq.s32.totalorder %s24, 3
      %p419 = por %p417, %p418
      %p420 = scmp.ne.s32.totalorder %s412, %s415
      %p421 = scmp.eq.s32.totalorder %s24, 0
      %p422 = por %p420, %p421
      %p423 = scmp.ne.s32.totalorder %s412, %s415
      %p424 = scmp.eq.s32.totalorder %s29, 3
      %p425 = por %p423, %p424
      %p426 = scmp.ne.s32.totalorder %s415, %s416
      %p427 = scmp.eq.s32.totalorder %s29, 0
      %p428 = por %p426, %p427
      %p429 = scmp.ne.s32.totalorder %s415, %s416
      %p430 = scmp.eq.s32.totalorder %s30, 3
      %p431 = por %p429, %p430
      %p433 = scmp.ne.s32.totalorder %s416, %s432
      %p434 = scmp.eq.s32.totalorder %s30, 0
      %p435 = por %p433, %p434
      %p436 = scmp.le.s32.totalorder 1, %s24
      %p437 = scmp.lt.s32.totalorder %s24, 5
      %p438 = pnand %p436, %p437
      %p439 = pneg %p438
      // Predicated region
      $region9: #{classifier_forward.2} parent=5 // pred_check
        _
      $region10: #{classifier_forward.2} parent=5 // pred_check_branch
        %441 = sbr.rel (%p438) target = $region12
      $region11: #{classifier_forward.2} parent=5 // pred_region
        %s442 = ssub.s32 %s24, 1
      $region12: #{classifier_forward.2} parent=5 // pred_fallthru
        _
      %p443 = scmp.lt.s32.totalorder %s24, 4
      // Predicated region
      $region13: #{classifier_forward.2} parent=5 // pred_check
        %p444 = pneg %p443
      $region14: #{classifier_forward.2} parent=5 // pred_check_branch
        %446 = sbr.rel (%p444) target = $region16
      $region15: #{classifier_forward.2} parent=5 // pred_region
        // Predicated region
        $region17: #{classifier_forward.2} parent=15 // pred_check
          %p447 = pneg %p56
        $region18: #{classifier_forward.2} parent=15 // pred_check_branch
          %449 = sbr.rel (%p447) target = $region20
        $region19: #{classifier_forward.2} parent=15 // pred_region
          %p450 = scmp.lt.s32.totalorder %s31, 1
          %s451 = scalar_select %p450, %s31, 1
          %s452 = smul.addr %s451, 8
          %s453 = scalar_lea.vmem %s0, %s452
        $region20: #{classifier_forward.2} parent=15 // pred_fallthru
          _
        // Predicated region
        $region21: #{classifier_forward.2} parent=15 // pred_check
          %p454 = pneg %p82
        $region22: #{classifier_forward.2} parent=15 // pred_check_branch
          %456 = sbr.rel (%p454) target = $region24
        $region23: #{classifier_forward.2} parent=15 // pred_region
          %p457 = scmp.lt.s32.totalorder %s32, 1
          %s458 = scalar_select %p457, %s32, 1
          %s459 = scalar_lea.vmem %s1, %s458
        $region24: #{classifier_forward.2} parent=15 // pred_fallthru
          _
        // Predicated region
        $region25: #{classifier_forward.2} parent=15 // pred_check
          %p460 = pneg %p108
        $region26: #{classifier_forward.2} parent=15 // pred_check_branch
          %462 = sbr.rel (%p460) target = $region28
        $region27: #{classifier_forward.2} parent=15 // pred_region
          %p463 = scmp.lt.s32.totalorder %s32, 1
          %s464 = scalar_select %p463, %s32, 1
          %s465 = scalar_lea.vmem %s2, %s464
        $region28: #{classifier_forward.2} parent=15 // pred_fallthru
          _
        // Predicated region
        $region29: #{classifier_forward.2} parent=15 // pred_check
          %p466 = pneg %p134
        $region30: #{classifier_forward.2} parent=15 // pred_check_branch
          %468 = sbr.rel (%p466) target = $region32
        $region31: #{classifier_forward.2} parent=15 // pred_region
          %p469 = scmp.lt.s32.totalorder %s32, 1
          %s470 = scalar_select %p469, %s32, 1
          %s471 = smul.addr %s470, 4
          %s472 = smul.addr %s471, 4
          %s473 = scalar_lea.vmem %s3, %s472
        $region32: #{classifier_forward.2} parent=15 // pred_fallthru
          _
        // Predicated region
        $region33: #{classifier_forward.2} parent=15 // pred_check
          %p474 = pneg %p160
        $region34: #{classifier_forward.2} parent=15 // pred_check_branch
          %476 = sbr.rel (%p474) target = $region36
        $region35: #{classifier_forward.2} parent=15 // pred_region
          %p477 = scmp.lt.s32.totalorder %s32, 1
          %s478 = scalar_select %p477, %s32, 1
          %s479 = scalar_lea.vmem %s4, %s478
        $region36: #{classifier_forward.2} parent=15 // pred_fallthru
          _
        // Predicated region
        $region37: #{classifier_forward.2} parent=15 // pred_check
          %p480 = pneg %p186
        $region38: #{classifier_forward.2} parent=15 // pred_check_branch
          %482 = sbr.rel (%p480) target = $region40
        $region39: #{classifier_forward.2} parent=15 // pred_region
          %p483 = scmp.lt.s32.totalorder %s32, 1
          %s484 = scalar_select %p483, %s32, 1
          %s485 = smul.addr %s484, 4
          %s486 = smul.addr %s485, 4
          %s487 = scalar_lea.vmem %s5, %s486
        $region40: #{classifier_forward.2} parent=15 // pred_fallthru
          _
        // Predicated region
        $region41: #{classifier_forward.2} parent=15 // pred_check
          %p488 = pneg %p212
        $region42: #{classifier_forward.2} parent=15 // pred_check_branch
          %490 = sbr.rel (%p488) target = $region44
        $region43: #{classifier_forward.2} parent=15 // pred_region
          %p491 = scmp.lt.s32.totalorder %s32, 1
          %s492 = scalar_select %p491, %s32, 1
          %s493 = scalar_lea.vmem %s6, %s492
        $region44: #{classifier_forward.2} parent=15 // pred_fallthru
          _
        // Predicated region
        $region45: #{classifier_forward.2} parent=15 // pred_check
          %p494 = pneg %p238
        $region46: #{classifier_forward.2} parent=15 // pred_check_branch
          %496 = sbr.rel (%p494) target = $region48
        $region47: #{classifier_forward.2} parent=15 // pred_region
          %p497 = scmp.lt.s32.totalorder %s32, 1
          %s498 = scalar_select %p497, %s32, 1
          %s499 = scalar_lea.vmem %s7, %s498
        $region48: #{classifier_forward.2} parent=15 // pred_fallthru
          _
        // Predicated region
        $region49: #{classifier_forward.2} parent=15 // pred_check
          %p500 = pneg %p264
        $region50: #{classifier_forward.2} parent=15 // pred_check_branch
          %502 = sbr.rel (%p500) target = $region52
        $region51: #{classifier_forward.2} parent=15 // pred_region
          %p503 = scmp.lt.s32.totalorder %s32, 1
          %s504 = scalar_select %p503, %s32, 1
          %s505 = scalar_lea.vmem %s8, %s504
        $region52: #{classifier_forward.2} parent=15 // pred_fallthru
          _
        // Predicated region
        $region53: #{classifier_forward.2} parent=15 // pred_check
          %p506 = pneg %p290
        $region54: #{classifier_forward.2} parent=15 // pred_check_branch
          %508 = sbr.rel (%p506) target = $region56
        $region55: #{classifier_forward.2} parent=15 // pred_region
          %p509 = scmp.lt.s32.totalorder %s32, 1
          %s510 = scalar_select %p509, %s32, 1
          %s511 = smul.addr %s510, 4
          %s512 = smul.addr %s511, 4
          %s513 = scalar_lea.vmem %s9, %s512
        $region56: #{classifier_forward.2} parent=15 // pred_fallthru
          _
        // Predicated region
        $region57: #{classifier_forward.2} parent=15 // pred_check
          %p514 = pneg %p316
        $region58: #{classifier_forward.2} parent=15 // pred_check_branch
          %516 = sbr.rel (%p514) target = $region60
        $region59: #{classifier_forward.2} parent=15 // pred_region
          %p517 = scmp.lt.s32.totalorder %s32, 1
          %s518 = scalar_select %p517, %s32, 1
          %s519 = scalar_lea.vmem %s10, %s518
        $region60: #{classifier_forward.2} parent=15 // pred_fallthru
          _
        // Predicated region
        $region61: #{classifier_forward.2} parent=15 // pred_check
          %p520 = pneg %p342
        $region62: #{classifier_forward.2} parent=15 // pred_check_branch
          %522 = sbr.rel (%p520) target = $region64
        $region63: #{classifier_forward.2} parent=15 // pred_region
          %p523 = scmp.lt.s32.totalorder %s32, 1
          %s524 = scalar_select %p523, %s32, 1
          %s525 = smul.addr %s524, 16
          %s526 = smul.addr %s525, 4
          %s527 = scalar_lea.vmem %s11, %s526
        $region64: #{classifier_forward.2} parent=15 // pred_fallthru
          _
        // Predicated region
        $region65: #{classifier_forward.2} parent=15 // pred_check
          %p528 = pneg %p368
        $region66: #{classifier_forward.2} parent=15 // pred_check_branch
          %530 = sbr.rel (%p528) target = $region68
        $region67: #{classifier_forward.2} parent=15 // pred_region
          %p531 = scmp.lt.s32.totalorder %s32, 1
          %s532 = scalar_select %p531, %s32, 1
          %s533 = scalar_lea.vmem %s12, %s532
        $region68: #{classifier_forward.2} parent=15 // pred_fallthru
          _
      $region16: #{classifier_forward.2} parent=5 // pred_fallthru
        _
      %p534 = scmp.le.s32.totalorder 1, %s24
      %p535 = scmp.lt.s32.totalorder %s24, 5
      %p536 = pnand %p534, %p535
      %p537 = pneg %p536
      // Predicated region
      $region69: #{classifier_forward.2} parent=5 // pred_check
        _
      $region70: #{classifier_forward.2} parent=5 // pred_check_branch
        %539 = sbr.rel (%p536) target = $region72
      $region71: #{classifier_forward.2} parent=5 // pred_region
        %s540 = ssub.s32 %s24, 1
        %p541 = scmp.lt.s32.totalorder %s33, 1
        %s542 = scalar_select %p541, %s33, 1
        %s543 = smul.addr %s542, 8
        %s544 = scalar_lea.vmem %s0, %s543
        %p545 = pneg %p62
        %p546 = pneg %p59
        %p547 = scmp.lt.s32.totalorder %s34, 1
        %s548 = scalar_select %p547, %s34, 1
        %s549 = scalar_lea.vmem %s1, %s548
        %p550 = pneg %p88
        %p551 = pneg %p85
        %p552 = scmp.lt.s32.totalorder %s34, 1
        %s553 = scalar_select %p552, %s34, 1
        %s554 = scalar_lea.vmem %s2, %s553
        %p555 = pneg %p114
        %p556 = pneg %p111
        %p557 = scmp.lt.s32.totalorder %s34, 1
        %s558 = scalar_select %p557, %s34, 1
        %s559 = smul.addr %s558, 4
        %s560 = smul.addr %s559, 4
        %s561 = scalar_lea.vmem %s3, %s560
        %p562 = pneg %p140
        %p563 = pneg %p137
        %p564 = scmp.lt.s32.totalorder %s34, 1
        %s565 = scalar_select %p564, %s34, 1
        %s566 = scalar_lea.vmem %s4, %s565
        %p567 = pneg %p166
        %p568 = pneg %p163
        %p569 = scmp.lt.s32.totalorder %s34, 1
        %s570 = scalar_select %p569, %s34, 1
        %s571 = smul.addr %s570, 4
        %s572 = smul.addr %s571, 4
        %s573 = scalar_lea.vmem %s5, %s572
        %p574 = pneg %p192
        %p575 = pneg %p189
        %p576 = scmp.lt.s32.totalorder %s34, 1
        %s577 = scalar_select %p576, %s34, 1
        %s578 = scalar_lea.vmem %s6, %s577
        %p579 = pneg %p218
        %p580 = pneg %p215
        %p581 = scmp.lt.s32.totalorder %s34, 1
        %s582 = scalar_select %p581, %s34, 1
        %s583 = scalar_lea.vmem %s7, %s582
        %p584 = pneg %p244
        %p585 = pneg %p241
        %p586 = scmp.lt.s32.totalorder %s34, 1
        %s587 = scalar_select %p586, %s34, 1
        %s588 = scalar_lea.vmem %s8, %s587
        %p589 = pneg %p270
        %p590 = pneg %p267
        %p591 = scmp.lt.s32.totalorder %s34, 1
        %s592 = scalar_select %p591, %s34, 1
        %s593 = smul.addr %s592, 4
        %s594 = smul.addr %s593, 4
        %s595 = scalar_lea.vmem %s9, %s594
        %p596 = pneg %p296
        %p597 = pneg %p293
        %p598 = scmp.lt.s32.totalorder %s34, 1
        %s599 = scalar_select %p598, %s34, 1
        %s600 = scalar_lea.vmem %s10, %s599
        %p601 = pneg %p322
        %p602 = pneg %p319
        %p603 = scmp.lt.s32.totalorder %s34, 1
        %s604 = scalar_select %p603, %s34, 1
        %s605 = smul.addr %s604, 16
        %s606 = smul.addr %s605, 4
        %s607 = scalar_lea.vmem %s11, %s606
        %p608 = pneg %p348
        %p609 = pneg %p345
        %p610 = scmp.lt.s32.totalorder %s34, 1
        %s611 = scalar_select %p610, %s34, 1
        %s612 = scalar_lea.vmem %s12, %s611
        %p613 = pneg %p374
        %p614 = pneg %p371
        %p615 = pneg %p400
        %p616 = pneg %p397
        %p617 = scmp.lt.s32.totalorder %s33, 1
        %s618 = scalar_select %p617, %s33, 1
        %s619 = smul.addr %s618, 8
        %s620 = scalar_lea.vmem %s13, %s619
        %p621 = pneg %p428
        %p622 = pneg %p425
        %s623 = sand.u32 %s415, 1
        %s624 = scalar_lea.sflag [#allocation4], %s623
        %s625 = sand.u32 %s415, 1
        %s626 = smul.addr %s625, 8
        %s627 = scalar_lea.vmem [#allocation3], %s626
        %p628 = scmp.lt.s32.totalorder %s33, 1
        %s629 = scalar_select %p628, %s33, 1
        %s630 = smul.addr %s629, 8
        %s631 = scalar_lea.vmem %s0, %s630
        %p632 = scmp.lt.s32.totalorder %s34, 1
        %s633 = scalar_select %p632, %s34, 1
        %s634 = scalar_lea.vmem %s1, %s633
        %p635 = scmp.lt.s32.totalorder %s34, 1
        %s636 = scalar_select %p635, %s34, 1
        %s637 = scalar_lea.vmem %s2, %s636
        %p638 = scmp.lt.s32.totalorder %s34, 1
        %s639 = scalar_select %p638, %s34, 1
        %s640 = smul.addr %s639, 4
        %s641 = smul.addr %s640, 4
        %s642 = scalar_lea.vmem %s3, %s641
        %p643 = scmp.lt.s32.totalorder %s34, 1
        %s644 = scalar_select %p643, %s34, 1
        %s645 = scalar_lea.vmem %s4, %s644
        %p646 = scmp.lt.s32.totalorder %s34, 1
        %s647 = scalar_select %p646, %s34, 1
        %s648 = smul.addr %s647, 4
        %s649 = smul.addr %s648, 4
        %s650 = scalar_lea.vmem %s5, %s649
        %p651 = scmp.lt.s32.totalorder %s34, 1
        %s652 = scalar_select %p651, %s34, 1
        %s653 = scalar_lea.vmem %s6, %s652
        %p654 = scmp.lt.s32.totalorder %s34, 1
        %s655 = scalar_select %p654, %s34, 1
        %s656 = scalar_lea.vmem %s7, %s655
        %p657 = scmp.lt.s32.totalorder %s34, 1
        %s658 = scalar_select %p657, %s34, 1
        %s659 = scalar_lea.vmem %s8, %s658
        %p660 = scmp.lt.s32.totalorder %s34, 1
        %s661 = scalar_select %p660, %s34, 1
        %s662 = smul.addr %s661, 4
        %s663 = smul.addr %s662, 4
        %s664 = scalar_lea.vmem %s9, %s663
        %p665 = scmp.lt.s32.totalorder %s34, 1
        %s666 = scalar_select %p665, %s34, 1
        %s667 = scalar_lea.vmem %s10, %s666
        %p668 = scmp.lt.s32.totalorder %s34, 1
        %s669 = scalar_select %p668, %s34, 1
        %s670 = smul.addr %s669, 16
        %s671 = smul.addr %s670, 4
        %s672 = scalar_lea.vmem %s11, %s671
        %p673 = scmp.lt.s32.totalorder %s34, 1
        %s674 = scalar_select %p673, %s34, 1
        %s675 = scalar_lea.vmem %s12, %s674
        %p676 = scmp.lt.s32.totalorder %s33, 1
        %s677 = scalar_select %p676, %s33, 1
        %s678 = smul.addr %s677, 8
        %s679 = scalar_lea.vmem %s13, %s678
        %p681 = scmp.eq.s32.totalorder %s34, 0
        // Predicated region
        $region73: #{classifier_forward.2} parent=71 // pred_check
          %p682 = pneg %p681
        $region74: #{classifier_forward.2} parent=71 // pred_check_branch
          %684 = sbr.rel (%p682) target = $region76
        $region75: #{classifier_forward.2} parent=71 // pred_region
          %v685 = vld [vmem:[%s631] sm:$0xff]
          %vm686 = vcmask 261120
          %687 = vst.msk [vmem:[#allocation2] sm:$0xff] %vm686, %v685
        $region76: #{classifier_forward.2} parent=71 // pred_fallthru
          _
        %v688 = vld [vmem:[#allocation2] sm:$0xff]
        %v689 = vld [vmem:[%s634] sm:$0x1]
        %v690 = vld [vmem:[%s637] sm:$0x1]
        %vm691 = vcmask 261120
        %v692 = vsel %vm691, %v688, 0.0
        %693 = vadd.xlane.f32.xlu0 %v692
        %v694 = vpop.xlane.xlu0 %693
        %v695 = vrcp.pop 32.0
        %v696 = vmul.f32 %v694, %v695
        %v697 = vsub.f32 %v688, %v696
        %v698 = vmul.f32 %v697, %v697
        %v699 = vsel %vm691, %v698, 0.0
        %700 = vadd.xlane.f32.xlu0 %v699
        %v701 = vpop.xlane.xlu0 %700
        %v702 = vmul.f32 %v701, %v695
        %v703 = vadd.f32 %v702, 1e-05
        %v704 = vrsqrt.pop %v703
        %v705 = vmul.f32 %v697, %v704
        %v707 = vlaneseq
        %v708 = vshrl.u32 %v707, 7
        %v709 = vsub.s32 0, %v708
        %v710 = vrot.slane %v689, %v709
        %v712 = vmul.f32 %v705, %v710
        %v714 = vlaneseq
        %v715 = vshrl.u32 %v714, 7
        %v716 = vsub.s32 0, %v715
        %v717 = vrot.slane %v690, %v716
        %v719 = vadd.f32 %v712, %v717
        %v720 = vpack.c.bf16 %v719, %v719
        %v721 = vld [vmem:[%s642] sm:$0xf]
        %v722 = vld [vmem:[%s642 + $0x4] sm:$0xf]
        %v723 = vld [vmem:[%s642 + $0x8] sm:$0xf]
        %v724 = vld [vmem:[%s642 + $0xc] sm:$0xf]
        %v725 = vld [vmem:[%s645] sm:$0x1]
        %v727 = vlaneseq
        %v728 = vshrl.u32 %v727, 7
        %v729 = vsub.s32 0, %v728
        %v730 = vrot.slane %v725, %v729
        %v736 = vunpack.c.l.b16 %v721
        %v737 = vunpack.c.l.b16 %v722
        %v738 = vunpack.c.l.b16 %v723
        %v739 = vunpack.c.l.b16 %v724
        %v740 = vpack.c.b16 %v737, %v736
        %v741 = vpack.c.b16 %v739, %v738
        %v745 = vsel %vm691, %v720, 0
        %747 = vmatprep.subr.bf16.mxu0 0
        %748 = vmatpush1.bf16.msra.mxu0 %v740
        %749 = vmatprep.subr.bf16.mxu0 0
        %750 = vmatpush1.bf16.msra.mxu0 %v741
        %751 = vmatprep.subr.bf16.mxu0 0
        %752 = vmatpush1.bf16.msra.mxu0 0
        %753 = vmatprep.subr.bf16.mxu0 0
        %754 = vmatpush1.bf16.msra.mxu0 0
        %755 = vmatprep.subr.bf16.mxu0 0
        %756 = vmatpush1.bf16.msra.mxu0 0
        %757 = vmatprep.subr.bf16.mxu0 0
        %758 = vmatpush1.bf16.msra.mxu0 0
        %759 = vmatprep.subr.bf16.mxu0 0
        %760 = vmatpush1.bf16.msra.mxu0 0
        %761 = vmatprep.subr.bf16.mxu0 0
        %762 = vmatpush1.bf16.msra.mxu0 0
        %763 = vmatprep.subr.bf16.mxu0 0
        %764 = vmatpush1.bf16.msra.mxu0 0
        %765 = vmatprep.subr.bf16.mxu0 0
        %766 = vmatpush1.bf16.msra.mxu0 0
        %767 = vmatprep.subr.bf16.mxu0 0
        %768 = vmatpush1.bf16.msra.mxu0 0
        %769 = vmatprep.subr.bf16.mxu0 0
        %770 = vmatpush1.bf16.msra.mxu0 0
        %771 = vmatprep.subr.bf16.mxu0 0
        %772 = vmatpush1.bf16.msra.mxu0 0
        %773 = vmatprep.subr.bf16.mxu0 0
        %774 = vmatpush1.bf16.msra.mxu0 0
        %775 = vmatprep.subr.bf16.mxu0 0
        %776 = vmatpush1.bf16.msra.mxu0 0
        %777 = vmatprep.subr.bf16.mxu0 0
        %778 = vmatpush1.bf16.msra.mxu0 0
        %779 = vmatprep.mubr.bf16.mxu0 0
        %780 = vmatmul.mubr.bf16.gmra.mrb[0].mxu0 %v745
        %v781 = vpop.f32.mrb[0].mxu0
        %v782 = vadd.f32 %v730, %v781
        %v783 = vpop.f32.mrb[0].mxu0
        %v784 = vpop.f32.mrb[0].mxu0
        %v785 = vpop.f32.mrb[0].mxu0
        %786 = vdwg.mxu0
        %v787 = vmul.f32 %v782, 0.25
        %v788 = vpack.c.bf16 %v787, %v787
        %v789 = vpack.c.bf16 %v782, %v782
        %791 = vrot.lane.b32.xlu0 %v789, 96
        %v792 = vpop.permute.xlu0 %791
        %vm793 = vcmask 130048
        %v795 = vsel %vm793, %v788, 0
        %v798 = vsel %vm793, %v792, 0
        %800 = vmatprep.subr.bf16.mxu0 0
        %801 = vmatpush1.bf16.xpose.msra.mxu0 %v798
        %802 = vmatprep.subr.bf16.mxu0 0
        %803 = vmatpush1.bf16.xpose.msra.mxu0 0
        %804 = vmatprep.subr.bf16.mxu0 0
        %805 = vmatpush1.bf16.xpose.msra.mxu0 0
        %806 = vmatprep.subr.bf16.mxu0 0
        %807 = vmatpush1.bf16.xpose.msra.mxu0 0
        %808 = vmatprep.subr.bf16.mxu0 0
        %809 = vmatpush1.bf16.xpose.msra.mxu0 0
        %810 = vmatprep.subr.bf16.mxu0 0
        %811 = vmatpush1.bf16.xpose.msra.mxu0 0
        %812 = vmatprep.subr.bf16.mxu0 0
        %813 = vmatpush1.bf16.xpose.msra.mxu0 0
        %814 = vmatprep.subr.bf16.mxu0 0
        %815 = vmatpush1.bf16.xpose.msra.mxu0 0
        %816 = vmatprep.subr.bf16.mxu0 0
        %817 = vmatpush1.bf16.xpose.msra.mxu0 0
        %818 = vmatprep.subr.bf16.mxu0 0
        %819 = vmatpush1.bf16.xpose.msra.mxu0 0
        %820 = vmatprep.subr.bf16.mxu0 0
        %821 = vmatpush1.bf16.xpose.msra.mxu0 0
        %822 = vmatprep.subr.bf16.mxu0 0
        %823 = vmatpush1.bf16.xpose.msra.mxu0 0
        %824 = vmatprep.subr.bf16.mxu0 0
        %825 = vmatpush1.bf16.xpose.msra.mxu0 0
        %826 = vmatprep.subr.bf16.mxu0 0
        %827 = vmatpush1.bf16.xpose.msra.mxu0 0
        %828 = vmatprep.subr.bf16.mxu0 0
        %829 = vmatpush1.bf16.xpose.msra.mxu0 0
        %830 = vmatprep.subr.bf16.mxu0 0
        %831 = vmatpush1.bf16.xpose.msra.mxu0 0
        %832 = vmatprep.mubr.bf16.mxu0 0
        %833 = vmatmul.mubr.bf16.gmra.mrb[0].mxu0 %v795
        %v834 = vpop.f32.mrb[0].mxu0
        %v835 = vadd.f32 0.0, %v834
        %v836 = vpop.f32.mrb[0].mxu0
        %v837 = vpop.f32.mrb[0].mxu0
        %v838 = vpop.f32.mrb[0].mxu0
        %839 = vdwg.mxu0
        %vm840 = vcmask 64512
        %v841 = vsel %vm840, %v835, -inf
        %842 = vmax.xlane.f32.xlu0 %v841
        %v843 = vpop.xlane.xlu0 %842
        %v844 = vsub.f32 %v835, %v843
        %v845 = vmul.f32 %v844, 1.442695
        %v846 = vpow.pop %v845
        %v847 = vsel %vm840, %v846, 0.0
        %848 = vadd.xlane.f32.xlu0 %v847
        %v849 = vpop.xlane.xlu0 %848
        %v850 = vrcp.pop %v849
        %v851 = vmul.f32 %v846, %v850
        %v852 = vpack.c.bf16 %v851, %v851
        %vm853 = vcmask 60416
        %854 = vst.msk [vmem:[%s627] sm:$0xf] %vm853, %v852
        %855 = vrot.lane.b32.xlu0 %v789, 64
        %v856 = vpop.permute.xlu0 %855
        %v858 = vsel %vm840, %v852, 0
        %vm860 = vcmask 1043456
        %v862 = vsel %vm860, %v856, 0
        %864 = vmatprep.subr.bf16.mxu0 0
        %865 = vmatpush1.bf16.msra.mxu0 %v862
        %866 = vmatprep.subr.bf16.mxu0 0
        %867 = vmatpush1.bf16.msra.mxu0 0
        %868 = vmatprep.subr.bf16.mxu0 0
        %869 = vmatpush1.bf16.msra.mxu0 0
        %870 = vmatprep.subr.bf16.mxu0 0
        %871 = vmatpush1.bf16.msra.mxu0 0
        %872 = vmatprep.subr.bf16.mxu0 0
        %873 = vmatpush1.bf16.msra.mxu0 0
        %874 = vmatprep.subr.bf16.mxu0 0
        %875 = vmatpush1.bf16.msra.mxu0 0
        %876 = vmatprep.subr.bf16.mxu0 0
        %877 = vmatpush1.bf16.msra.mxu0 0
        %878 = vmatprep.subr.bf16.mxu0 0
        %879 = vmatpush1.bf16.msra.mxu0 0
        %880 = vmatprep.subr.bf16.mxu0 0
        %881 = vmatpush1.bf16.msra.mxu0 0
        %882 = vmatprep.subr.bf16.mxu0 0
        %883 = vmatpush1.bf16.msra.mxu0 0
        %884 = vmatprep.subr.bf16.mxu0 0
        %885 = vmatpush1.bf16.msra.mxu0 0
        %886 = vmatprep.subr.bf16.mxu0 0
        %887 = vmatpush1.bf16.msra.mxu0 0
        %888 = vmatprep.subr.bf16.mxu0 0
        %889 = vmatpush1.bf16.msra.mxu0 0
        %890 = vmatprep.subr.bf16.mxu0 0
        %891 = vmatpush1.bf16.msra.mxu0 0
        %892 = vmatprep.subr.bf16.mxu0 0
        %893 = vmatpush1.bf16.msra.mxu0 0
        %894 = vmatprep.subr.bf16.mxu0 0
        %895 = vmatpush1.bf16.msra.mxu0 0
        %896 = vmatprep.mubr.bf16.mxu0 0
        %897 = vmatmul.mubr.bf16.gmra.mrb[0].mxu0 %v858
        %v898 = vpop.f32.mrb[0].mxu0
        %v899 = vadd.f32 0.0, %v898
        %v900 = vpop.f32.mrb[0].mxu0
        %v901 = vpop.f32.mrb[0].mxu0
        %v902 = vpop.f32.mrb[0].mxu0
        %903 = vdwg.mxu0
        %905 = vrot.lane.b32.xlu0 %v788, 112
        %v906 = vpop.permute.xlu0 %905
        %907 = vrot.lane.b32.xlu0 %v789, 80
        %v908 = vpop.permute.xlu0 %907
        %v910 = vsel %vm793, %v906, 0
        %v913 = vsel %vm793, %v908, 0
        %915 = vmatprep.subr.bf16.mxu0 0
        %916 = vmatpush1.bf16.xpose.msra.mxu0 %v913
        %917 = vmatprep.subr.bf16.mxu0 0
        %918 = vmatpush1.bf16.xpose.msra.mxu0 0
        %919 = vmatprep.subr.bf16.mxu0 0
        %920 = vmatpush1.bf16.xpose.msra.mxu0 0
        %921 = vmatprep.subr.bf16.mxu0 0
        %922 = vmatpush1.bf16.xpose.msra.mxu0 0
        %923 = vmatprep.subr.bf16.mxu0 0
        %924 = vmatpush1.bf16.xpose.msra.mxu0 0
        %925 = vmatprep.subr.bf16.mxu0 0
        %926 = vmatpush1.bf16.xpose.msra.mxu0 0
        %927 = vmatprep.subr.bf16.mxu0 0
        %928 = vmatpush1.bf16.xpose.msra.mxu0 0
        %929 = vmatprep.subr.bf16.mxu0 0
        %930 = vmatpush1.bf16.xpose.msra.mxu0 0
        %931 = vmatprep.subr.bf16.mxu0 0
        %932 = vmatpush1.bf16.xpose.msra.mxu0 0
        %933 = vmatprep.subr.bf16.mxu0 0
        %934 = vmatpush1.bf16.xpose.msra.mxu0 0
        %935 = vmatprep.subr.bf16.mxu0 0
        %936 = vmatpush1.bf16.xpose.msra.mxu0 0
        %937 = vmatprep.subr.bf16.mxu0 0
        %938 = vmatpush1.bf16.xpose.msra.mxu0 0
        %939 = vmatprep.subr.bf16.mxu0 0
        %940 = vmatpush1.bf16.xpose.msra.mxu0 0
        %941 = vmatprep.subr.bf16.mxu0 0
        %942 = vmatpush1.bf16.xpose.msra.mxu0 0
        %943 = vmatprep.subr.bf16.mxu0 0
        %944 = vmatpush1.bf16.xpose.msra.mxu0 0
        %945 = vmatprep.subr.bf16.mxu0 0
        %946 = vmatpush1.bf16.xpose.msra.mxu0 0
        %947 = vmatprep.mubr.bf16.mxu0 0
        %948 = vmatmul.mubr.bf16.gmra.mrb[0].mxu0 %v910
        %v949 = vpop.f32.mrb[0].mxu0
        %v950 = vadd.f32 0.0, %v949
        %v951 = vpop.f32.mrb[0].mxu0
        %v952 = vpop.f32.mrb[0].mxu0
        %v953 = vpop.f32.mrb[0].mxu0
        %954 = vdwg.mxu0
        %v955 = vsel %vm840, %v950, -inf
        %956 = vmax.xlane.f32.xlu0 %v955
        %v957 = vpop.xlane.xlu0 %956
        %v958 = vsub.f32 %v950, %v957
        %v959 = vmul.f32 %v958, 1.442695
        %v960 = vpow.pop %v959
        %v961 = vsel %vm840, %v960, 0.0
        %962 = vadd.xlane.f32.xlu0 %v961
        %v963 = vpop.xlane.xlu0 %962
        %v964 = vrcp.pop %v963
        %v965 = vmul.f32 %v960, %v964
        %v966 = vpack.c.bf16 %v965, %v965
        %s967 = scalar_lea.vmem %s627, 4 [#allocation3]
        %968 = vst.msk [vmem:[%s967] sm:$0xf] %vm853, %v966
        %969 = vrot.lane.b32.xlu0 %v789, 48
        %v970 = vpop.permute.xlu0 %969
        %v972 = vsel %vm840, %v966, 0
        %v975 = vsel %vm860, %v970, 0
        %977 = vmatprep.subr.bf16.mxu0 0
        %978 = vmatpush1.bf16.msra.mxu0 %v975
        %979 = vmatprep.subr.bf16.mxu0 0
        %980 = vmatpush1.bf16.msra.mxu0 0
        %981 = vmatprep.subr.bf16.mxu0 0
        %982 = vmatpush1.bf16.msra.mxu0 0
        %983 = vmatprep.subr.bf16.mxu0 0
        %984 = vmatpush1.bf16.msra.mxu0 0
        %985 = vmatprep.subr.bf16.mxu0 0
        %986 = vmatpush1.bf16.msra.mxu0 0
        %987 = vmatprep.subr.bf16.mxu0 0
        %988 = vmatpush1.bf16.msra.mxu0 0
        %989 = vmatprep.subr.bf16.mxu0 0
        %990 = vmatpush1.bf16.msra.mxu0 0
        %991 = vmatprep.subr.bf16.mxu0 0
        %992 = vmatpush1.bf16.msra.mxu0 0
        %993 = vmatprep.subr.bf16.mxu0 0
        %994 = vmatpush1.bf16.msra.mxu0 0
        %995 = vmatprep.subr.bf16.mxu0 0
        %996 = vmatpush1.bf16.msra.mxu0 0
        %997 = vmatprep.subr.bf16.mxu0 0
        %998 = vmatpush1.bf16.msra.mxu0 0
        %999 = vmatprep.subr.bf16.mxu0 0
        %1000 = vmatpush1.bf16.msra.mxu0 0
        %1001 = vmatprep.subr.bf16.mxu0 0
        %1002 = vmatpush1.bf16.msra.mxu0 0
        %1003 = vmatprep.subr.bf16.mxu0 0
        %1004 = vmatpush1.bf16.msra.mxu0 0
        %1005 = vmatprep.subr.bf16.mxu0 0
        %1006 = vmatpush1.bf16.msra.mxu0 0
        %1007 = vmatprep.subr.bf16.mxu0 0
        %1008 = vmatpush1.bf16.msra.mxu0 0
        %1009 = vmatprep.mubr.bf16.mxu0 0
        %1010 = vmatmul.mubr.bf16.gmra.mrb[0].mxu0 %v972
        %v1011 = vpop.f32.mrb[0].mxu0
        %v1012 = vadd.f32 0.0, %v1011
        %v1013 = vpop.f32.mrb[0].mxu0
        %v1014 = vpop.f32.mrb[0].mxu0
        %v1015 = vpop.f32.mrb[0].mxu0
        %1016 = vdwg.mxu0
        %1018 = vrot.lane.b32.xlu0 %v1012, 16
        %v1019 = vpop.permute.xlu0 %1018
        %v1021 = vsel %vm793, %v899, %v1019
        %v1022 = vpack.c.bf16 %v1021, %v1021
        %v1023 = vld [vmem:[%s650] sm:$0xf]
        %v1024 = vld [vmem:[%s650 + $0x4] sm:$0xf]
        %v1025 = vld [vmem:[%s650 + $0x8] sm:$0xf]
        %v1026 = vld [vmem:[%s650 + $0xc] sm:$0xf]
        %v1031 = vunpack.c.l.b16 %v1023
        %v1032 = vunpack.c.l.b16 %v1024
        %v1033 = vunpack.c.l.b16 %v1025
        %v1034 = vunpack.c.l.b16 %v1026
        %v1035 = vpack.c.b16 %v1032, %v1031
        %v1036 = vpack.c.b16 %v1034, %v1033
        %v1040 = vsel %vm691, %v1022, 0
        %1042 = vmatprep.subr.bf16.mxu0 0
        %1043 = vmatpush1.bf16.msra.mxu0 %v1035
        %1044 = vmatprep.subr.bf16.mxu0 0
        %1045 = vmatpush1.bf16.msra.mxu0 %v1036
        %1046 = vmatprep.subr.bf16.mxu0 0
        %1047 = vmatpush1.bf16.msra.mxu0 0
        %1048 = vmatprep.subr.bf16.mxu0 0
        %1049 = vmatpush1.bf16.msra.mxu0 0
        %1050 = vmatprep.subr.bf16.mxu0 0
        %1051 = vmatpush1.bf16.msra.mxu0 0
        %1052 = vmatprep.subr.bf16.mxu0 0
        %1053 = vmatpush1.bf16.msra.mxu0 0
        %1054 = vmatprep.subr.bf16.mxu0 0
        %1055 = vmatpush1.bf16.msra.mxu0 0
        %1056 = vmatprep.subr.bf16.mxu0 0
        %1057 = vmatpush1.bf16.msra.mxu0 0
        %1058 = vmatprep.subr.bf16.mxu0 0
        %1059 = vmatpush1.bf16.msra.mxu0 0
        %1060 = vmatprep.subr.bf16.mxu0 0
        %1061 = vmatpush1.bf16.msra.mxu0 0
        %1062 = vmatprep.subr.bf16.mxu0 0
        %1063 = vmatpush1.bf16.msra.mxu0 0
        %1064 = vmatprep.subr.bf16.mxu0 0
        %1065 = vmatpush1.bf16.msra.mxu0 0
        %1066 = vmatprep.subr.bf16.mxu0 0
        %1067 = vmatpush1.bf16.msra.mxu0 0
        %1068 = vmatprep.subr.bf16.mxu0 0
        %1069 = vmatpush1.bf16.msra.mxu0 0
        %1070 = vmatprep.subr.bf16.mxu0 0
        %1071 = vmatpush1.bf16.msra.mxu0 0
        %1072 = vmatprep.subr.bf16.mxu0 0
        %1073 = vmatpush1.bf16.msra.mxu0 0
        %1074 = vmatprep.mubr.bf16.mxu0 0
        %1075 = vmatmul.mubr.bf16.gmra.mrb[0].mxu0 %v1040
        %v1076 = vpop.f32.mrb[0].mxu0
        %v1077 = vadd.f32 0.0, %v1076
        %v1078 = vpop.f32.mrb[0].mxu0
        %v1079 = vpop.f32.mrb[0].mxu0
        %v1080 = vpop.f32.mrb[0].mxu0
        %1081 = vdwg.mxu0
        %v1082 = vadd.f32 %v688, %v1077
        %v1083 = vld [vmem:[%s653] sm:$0x1]
        %v1085 = vlaneseq
        %v1086 = vshrl.u32 %v1085, 7
        %v1087 = vsub.s32 0, %v1086
        %v1088 = vrot.slane %v1083, %v1087
        %v1090 = vadd.f32 %v1082, %v1088
        %v1091 = vld [vmem:[%s656] sm:$0x1]
        %v1092 = vld [vmem:[%s659] sm:$0x1]
        %v1093 = vsel %vm691, %v1090, 0.0
        %1094 = vadd.xlane.f32.xlu0 %v1093
        %v1095 = vpop.xlane.xlu0 %1094
        %v1096 = vmul.f32 %v1095, %v695
        %v1097 = vsub.f32 %v1090, %v1096
        %v1098 = vmul.f32 %v1097, %v1097
        %v1099 = vsel %vm691, %v1098, 0.0
        %1100 = vadd.xlane.f32.xlu0 %v1099
        %v1101 = vpop.xlane.xlu0 %1100
        %v1102 = vmul.f32 %v1101, %v695
        %v1103 = vadd.f32 %v1102, 1e-05
        %v1104 = vrsqrt.pop %v1103
        %v1105 = vmul.f32 %v1097, %v1104
        %v1107 = vlaneseq
        %v1108 = vshrl.u32 %v1107, 7
        %v1109 = vsub.s32 0, %v1108
        %v1110 = vrot.slane %v1091, %v1109
        %v1112 = vmul.f32 %v1105, %v1110
        %v1114 = vlaneseq
        %v1115 = vshrl.u32 %v1114, 7
        %v1116 = vsub.s32 0, %v1115
        %v1117 = vrot.slane %v1092, %v1116
        %v1119 = vadd.f32 %v1112, %v1117
        %v1120 = vpack.c.bf16 %v1119, %v1119
        %v1121 = vld [vmem:[%s664] sm:$0xf]
        %v1122 = vld [vmem:[%s664 + $0x4] sm:$0xf]
        %v1123 = vld [vmem:[%s664 + $0x8] sm:$0xf]
        %v1124 = vld [vmem:[%s664 + $0xc] sm:$0xf]
        %v1125 = vld [vmem:[%s667] sm:$0x1]
        %v1127 = vlaneseq
        %v1128 = vshrl.u32 %v1127, 7
        %v1129 = vsub.s32 0, %v1128
        %v1130 = vrot.slane %v1125, %v1129
        %v1136 = vunpack.c.l.b16 %v1121
        %v1137 = vunpack.c.l.b16 %v1122
        %v1138 = vunpack.c.l.b16 %v1123
        %v1139 = vunpack.c.l.b16 %v1124
        %v1140 = vpack.c.b16 %v1137, %v1136
        %v1141 = vpack.c.b16 %v1139, %v1138
        %v1145 = vsel %vm691, %v1120, 0
        %1147 = vmatprep.subr.bf16.mxu0 0
        %1148 = vmatpush1.bf16.msra.mxu0 %v1140
        %1149 = vmatprep.subr.bf16.mxu0 0
        %1150 = vmatpush1.bf16.msra.mxu0 %v1141
        %1151 = vmatprep.subr.bf16.mxu0 0
        %1152 = vmatpush1.bf16.msra.mxu0 0
        %1153 = vmatprep.subr.bf16.mxu0 0
        %1154 = vmatpush1.bf16.msra.mxu0 0
        %1155 = vmatprep.subr.bf16.mxu0 0
        %1156 = vmatpush1.bf16.msra.mxu0 0
        %1157 = vmatprep.subr.bf16.mxu0 0
        %1158 = vmatpush1.bf16.msra.mxu0 0
        %1159 = vmatprep.subr.bf16.mxu0 0
        %1160 = vmatpush1.bf16.msra.mxu0 0
        %1161 = vmatprep.subr.bf16.mxu0 0
        %1162 = vmatpush1.bf16.msra.mxu0 0
        %1163 = vmatprep.subr.bf16.mxu0 0
        %1164 = vmatpush1.bf16.msra.mxu0 0
        %1165 = vmatprep.subr.bf16.mxu0 0
        %1166 = vmatpush1.bf16.msra.mxu0 0
        %1167 = vmatprep.subr.bf16.mxu0 0
        %1168 = vmatpush1.bf16.msra.mxu0 0
        %1169 = vmatprep.subr.bf16.mxu0 0
        %1170 = vmatpush1.bf16.msra.mxu0 0
        %1171 = vmatprep.subr.bf16.mxu0 0
        %1172 = vmatpush1.bf16.msra.mxu0 0
        %1173 = vmatprep.subr.bf16.mxu0 0
        %1174 = vmatpush1.bf16.msra.mxu0 0
        %1175 = vmatprep.subr.bf16.mxu0 0
        %1176 = vmatpush1.bf16.msra.mxu0 0
        %1177 = vmatprep.subr.bf16.mxu0 0
        %1178 = vmatpush1.bf16.msra.mxu0 0
        %1179 = vmatprep.mubr.bf16.mxu0 0
        %1180 = vmatmul.mubr.bf16.gmra.mrb[0].mxu0 %v1145
        %v1181 = vpop.f32.mrb[0].mxu0
        %v1182 = vadd.f32 %v1130, %v1181
        %v1183 = vpop.f32.mrb[0].mxu0
        %v1184 = vpop.f32.mrb[0].mxu0
        %v1185 = vpop.f32.mrb[0].mxu0
        %1186 = vdwg.mxu0
        %v1187 = vmax.f32 %v1182, 0.0
        %v1188 = vpack.c.bf16 %v1187, %v1187
        %v1189 = vld [vmem:[%s672] sm:$0xf]
        %v1190 = vld [vmem:[%s672 + $0x4] sm:$0xf]
        %v1191 = vld [vmem:[%s672 + $0x8] sm:$0xf]
        %v1192 = vld [vmem:[%s672 + $0xc] sm:$0xf]
        %v1193 = vld [vmem:[%s672 + $0x10] sm:$0xf]
        %v1194 = vld [vmem:[%s672 + $0x14] sm:$0xf]
        %v1195 = vld [vmem:[%s672 + $0x18] sm:$0xf]
        %v1196 = vld [vmem:[%s672 + $0x1c] sm:$0xf]
        %v1197 = vld [vmem:[%s672 + $0x20] sm:$0xf]
        %v1198 = vld [vmem:[%s672 + $0x24] sm:$0xf]
        %v1199 = vld [vmem:[%s672 + $0x28] sm:$0xf]
        %v1200 = vld [vmem:[%s672 + $0x2c] sm:$0xf]
        %v1201 = vld [vmem:[%s672 + $0x30] sm:$0xf]
        %v1202 = vld [vmem:[%s672 + $0x34] sm:$0xf]
        %v1203 = vld [vmem:[%s672 + $0x38] sm:$0xf]
        %v1204 = vld [vmem:[%s672 + $0x3c] sm:$0xf]
        %v1221 = vunpack.c.l.b16 %v1189
        %v1222 = vunpack.c.l.b16 %v1190
        %v1223 = vunpack.c.l.b16 %v1191
        %v1224 = vunpack.c.l.b16 %v1192
        %v1225 = vunpack.c.l.b16 %v1193
        %v1226 = vunpack.c.l.b16 %v1194
        %v1227 = vunpack.c.l.b16 %v1195
        %v1228 = vunpack.c.l.b16 %v1196
        %v1229 = vunpack.c.l.b16 %v1197
        %v1230 = vunpack.c.l.b16 %v1198
        %v1231 = vunpack.c.l.b16 %v1199
        %v1232 = vunpack.c.l.b16 %v1200
        %v1233 = vunpack.c.l.b16 %v1201
        %v1234 = vunpack.c.l.b16 %v1202
        %v1235 = vunpack.c.l.b16 %v1203
        %v1236 = vunpack.c.l.b16 %v1204
        %v1237 = vpack.c.b16 %v1222, %v1221
        %v1238 = vpack.c.b16 %v1224, %v1223
        %v1239 = vpack.c.b16 %v1226, %v1225
        %v1240 = vpack.c.b16 %v1228, %v1227
        %v1241 = vpack.c.b16 %v1230, %v1229
        %v1242 = vpack.c.b16 %v1232, %v1231
        %v1243 = vpack.c.b16 %v1234, %v1233
        %v1244 = vpack.c.b16 %v1236, %v1235
        %1253 = vmatprep.subr.bf16.mxu0 0
        %1254 = vmatpush1.bf16.msra.mxu0 %v1237
        %1255 = vmatprep.subr.bf16.mxu0 0
        %1256 = vmatpush1.bf16.msra.mxu0 %v1238
        %1257 = vmatprep.subr.bf16.mxu0 0
        %1258 = vmatpush1.bf16.msra.mxu0 %v1239
        %1259 = vmatprep.subr.bf16.mxu0 0
        %1260 = vmatpush1.bf16.msra.mxu0 %v1240
        %1261 = vmatprep.subr.bf16.mxu0 0
        %1262 = vmatpush1.bf16.msra.mxu0 %v1241
        %1263 = vmatprep.subr.bf16.mxu0 0
        %1264 = vmatpush1.bf16.msra.mxu0 %v1242
        %1265 = vmatprep.subr.bf16.mxu0 0
        %1266 = vmatpush1.bf16.msra.mxu0 %v1243
        %1267 = vmatprep.subr.bf16.mxu0 0
        %1268 = vmatpush1.bf16.msra.mxu0 %v1244
        %1269 = vmatprep.subr.bf16.mxu0 0
        %1270 = vmatpush1.bf16.msra.mxu0 0
        %1271 = vmatprep.subr.bf16.mxu0 0
        %1272 = vmatpush1.bf16.msra.mxu0 0
        %1273 = vmatprep.subr.bf16.mxu0 0
        %1274 = vmatpush1.bf16.msra.mxu0 0
        %1275 = vmatprep.subr.bf16.mxu0 0
        %1276 = vmatpush1.bf16.msra.mxu0 0
        %1277 = vmatprep.subr.bf16.mxu0 0
        %1278 = vmatpush1.bf16.msra.mxu0 0
        %1279 = vmatprep.subr.bf16.mxu0 0
        %1280 = vmatpush1.bf16.msra.mxu0 0
        %1281 = vmatprep.subr.bf16.mxu0 0
        %1282 = vmatpush1.bf16.msra.mxu0 0
        %1283 = vmatprep.subr.bf16.mxu0 0
        %1284 = vmatpush1.bf16.msra.mxu0 0
        %1285 = vmatprep.mubr.bf16.mxu0 0
        %1286 = vmatmul.mubr.bf16.gmra.mrb[0].mxu0 %v1188
        %v1287 = vpop.f32.mrb[0].mxu0
        %v1288 = vadd.f32 0.0, %v1287
        %v1289 = vpop.f32.mrb[0].mxu0
        %v1290 = vpop.f32.mrb[0].mxu0
        %v1291 = vpop.f32.mrb[0].mxu0
        %1292 = vdwg.mxu0
        %v1293 = vadd.f32 %v1090, %v1288
        %v1294 = vld [vmem:[%s675] sm:$0x1]
        %v1296 = vlaneseq
        %v1297 = vshrl.u32 %v1296, 7
        %v1298 = vsub.s32 0, %v1297
        %v1299 = vrot.slane %v1294, %v1298
        %v1301 = vadd.f32 %v1293, %v1299
        %1302 = vst.msk [vmem:[#allocation2] sm:$0xff] %vm691, %v1301
        %p1303 = scmp.eq.s32.totalorder %s34, 1
        // Predicated region
        $region77: #{classifier_forward.2} parent=71 // pred_check
          %p1304 = pneg %p1303
        $region78: #{classifier_forward.2} parent=71 // pred_check_branch
          %1306 = sbr.rel (%p1304) target = $region80
        $region79: #{classifier_forward.2} parent=71 // pred_region
          %1307 = vst.msk [vmem:[%s679] sm:$0xff] %vm691, %v1301
        $region80: #{classifier_forward.2} parent=71 // pred_fallthru
          _
        %p1308 = scmp.lt.s32.totalorder %s33, 1
        %s1309 = scalar_select %p1308, %s33, 1
        %s1310 = smul.addr %s1309, 8
        %s1311 = scalar_lea.vmem %s13, %s1310
        %s1312 = sand.u32 %s415, 1
        %s1313 = scalar_lea.sflag [#allocation4], %s1312
        %s1314 = sand.u32 %s415, 1
        %s1315 = smul.addr %s1314, 8
        %s1316 = scalar_lea.vmem [#allocation3], %s1315
        // Predicated region
        $region81: #{classifier_forward.2} parent=71 // pred_check
          %p1317 = pneg %p397
        $region82: #{classifier_forward.2} parent=71 // pred_check_branch
          %1319 = sbr.rel (%p1317) target = $region84
        $region83: #{classifier_forward.2} parent=71 // pred_region
          _
        $region84: #{classifier_forward.2} parent=71 // pred_fallthru
          _
        // Predicated region
        $region85: #{classifier_forward.2} parent=71 // pred_check
          %p1320 = pneg %p425
        $region86: #{classifier_forward.2} parent=71 // pred_check_branch
          %1322 = sbr.rel (%p1320) target = $region88
        $region87: #{classifier_forward.2} parent=71 // pred_region
          %s1324 = ssub.s32 128, 128
          %1325 = vsyncadd %s1313, %s1324
          %s1326 = smul.addr %s33, 2
          %s1327 = smul.addr %s34, 4
          %s1328 = sadd.s32 %s1326, %s1327
          %s1329 = smul.addr %s1328, 64
          %s1330 = scalar_lea.hbm %s14, %s1329
          %s1331 = sshll.u32 %s1316, 4
          %s1332 = int_to_ptr.vmem [resolvable:$true] %s1331
          %1337 = dma.vmem_to_hbm [thread:$0]  %s1332, 128, %s1330, %s1313, 64, 64, 4
        $region88: #{classifier_forward.2} parent=71 // pred_fallthru
          _
      $region72: #{classifier_forward.2} parent=5 // pred_fallthru
        _
      %p1338 = scmp.le.s32.totalorder 2, %s24
      // Predicated region
      $region89: #{classifier_forward.2} parent=5 // pred_check
        %p1339 = pneg %p1338
      $region90: #{classifier_forward.2} parent=5 // pred_check_branch
        %1341 = sbr.rel (%p1339) target = $region92
      $region91: #{classifier_forward.2} parent=5 // pred_region
        %s1342 = ssub.s32 %s24, 2
        // Predicated region
        $region93: #{classifier_forward.2} parent=91 // pred_check
          %p1343 = pneg %p403
        $region94: #{classifier_forward.2} parent=91 // pred_check_branch
          %1345 = sbr.rel (%p1343) target = $region96
        $region95: #{classifier_forward.2} parent=91 // pred_region
          %p1346 = scmp.lt.s32.totalorder %s35, 1
          %s1347 = scalar_select %p1346, %s35, 1
          %s1348 = smul.addr %s1347, 8
          %s1349 = scalar_lea.vmem %s13, %s1348
        $region96: #{classifier_forward.2} parent=91 // pred_fallthru
          _
        // Predicated region
        $region97: #{classifier_forward.2} parent=91 // pred_check
          %p1350 = pneg %p431
        $region98: #{classifier_forward.2} parent=91 // pred_check_branch
          %1352 = sbr.rel (%p1350) target = $region100
        $region99: #{classifier_forward.2} parent=91 // pred_region
          %s1353 = sand.u32 %s416, 1
          %s1354 = scalar_lea.sflag [#allocation4], %s1353
          %s1355 = sand.u32 %s416, 1
          %s1356 = smul.addr %s1355, 8
          %s1357 = scalar_lea.vmem [#allocation3], %s1356
          %1358 = dma.done %s1354, 128
        $region100: #{classifier_forward.2} parent=91 // pred_fallthru
          _
      $region92: #{classifier_forward.2} parent=5 // pred_fallthru
        _
    $region6: #{classifier_forward.2} parent=1 // loop_footer
      %s28 = sadd.s32 1, %s24
    $region7: #{classifier_forward.2} parent=1 // loop_footer_branch
      %23 = sbr.rel target = $region3
    $region8: #{classifier_forward.2} parent=1 // loop_exit
      _
    %1359 = vsyncpa [#allocation4], 1
    %s1360 = scalar_lea.sflag [#allocation4], 1
    %1361 = vsyncpa %s1360, 1

</llo_original>
